<compile_context>
chip_gen: v5e
topology: v5e:2x2
jax: 0.10.0
libtpu: 0.0.40
codegen_flags: <defaults>
</compile_context>

<pallas_src>
import math
import functools

import jax
import jax.numpy as jnp
from jax.experimental import pallas as pl
from jax.experimental.pallas import tpu as pltpu


# ----------------------------------------------------------------------------
# Fused kernel: embed-scale + PE + nlayers x encoder layer + CLS slice
# ----------------------------------------------------------------------------
def fused_transformer_kernel(emb_ref, pe_ref,
                             wqkv_ref, bqkv_ref, wout_ref, bout_ref,
                             ln1g_ref, ln1b_ref,
                             w1_ref, b1_ref, w2_ref, b2_ref,
                             ln2g_ref, ln2b_ref,
                             o_ref, *, nlayers, nhead, scale, eps=1e-5):
    B, S, D = emb_ref.shape
    BS = B * S
    dh = D // nhead
    inv_sqrt = 1.0 / math.sqrt(dh)
    mm_dtype = wqkv_ref.dtype            # bf16 matmul operands, f32 accumulation

    # ---- embedding scale + positional encoding (dropout = identity) ----
    x = emb_ref[...] * scale + pe_ref[...][None, :, :]      # (B, S, D) f32
    x = x.reshape(BS, D)                                    # whole batch, one slab

    # nlayers is a small compile-time constant -> static unrolled loop;
    # all weights stay resident in VMEM for the whole kernel.
    for li in range(nlayers):
        # ---- multi-head self-attention (single fused QKV projection) ----
        qkv = jnp.dot(x.astype(mm_dtype), wqkv_ref[li],
                      preferred_element_type=jnp.float32) + bqkv_ref[li]   # (BS, 3D)

        # split heads and batch them along a single leading axis z = h*B + b
        q_hb = jnp.concatenate(
            [qkv[:, h * dh:(h + 1) * dh].reshape(B, S, dh)
             for h in range(nhead)], axis=0)                               # (H*B,S,dh)
        k_hb = jnp.concatenate(
            [qkv[:, D + h * dh:D + (h + 1) * dh].reshape(B, S, dh)
             for h in range(nhead)], axis=0)
        v_hb = jnp.concatenate(
            [qkv[:, 2 * D + h * dh:2 * D + (h + 1) * dh].reshape(B, S, dh)
             for h in range(nhead)], axis=0)

        qz = q_hb.astype(mm_dtype)
        kz = k_hb.astype(mm_dtype)
        vz = v_hb.astype(mm_dtype)

        s = jnp.einsum('zqd,zkd->zqk', qz, kz,
                       preferred_element_type=jnp.float32) * inv_sqrt      # (H*B,S,S)
        m = jnp.max(s, axis=-1, keepdims=True)
        e = jnp.exp(s - m)
        p = e * pl.reciprocal(jnp.sum(e, axis=-1, keepdims=True), approx=True)
        ctx = jnp.einsum('zqk,zkd->zqd', p.astype(mm_dtype), vz,
                         preferred_element_type=jnp.float32)               # (H*B,S,dh)

        # concat heads along the feature dim, then ONE output projection
        ctx_cat = jnp.concatenate(
            [ctx[h * B:(h + 1) * B].reshape(BS, dh) for h in range(nhead)],
            axis=-1)                                                       # (BS, D)
        attn = jnp.dot(ctx_cat.astype(mm_dtype), wout_ref[li],
                       preferred_element_type=jnp.float32) + bout_ref[li]  # (BS, D)

        # ---- residual + LayerNorm1 (post-norm, f32 statistics) ----
        y = x + attn
        mu = jnp.mean(y, axis=-1, keepdims=True)
        var = jnp.mean((y - mu) ** 2, axis=-1, keepdims=True)
        y = (y - mu) * jax.lax.rsqrt(var + eps) * ln1g_ref[li] + ln1b_ref[li]

        # ---- feed-forward: Linear -> ReLU -> Linear ----
        h1 = jnp.dot(y.astype(mm_dtype), w1_ref[li],
                     preferred_element_type=jnp.float32) + b1_ref[li]      # (BS, d_hid)
        h1 = jnp.maximum(h1, 0.0)
        ff = jnp.dot(h1.astype(mm_dtype), w2_ref[li],
                     preferred_element_type=jnp.float32) + b2_ref[li]      # (BS, D)

        # ---- residual + LayerNorm2 ----
        z = y + ff
        mu2 = jnp.mean(z, axis=-1, keepdims=True)
        var2 = jnp.mean((z - mu2) ** 2, axis=-1, keepdims=True)
        x = (z - mu2) * jax.lax.rsqrt(var2 + eps) * ln2g_ref[li] + ln2b_ref[li]

    # output[:, 0, :]  (CLS-token representation), written directly as (B, D)
    o_ref[...] = x.reshape(B, S, D)[:, 0, :]


# ----------------------------------------------------------------------------
# pallas_call plumbing
# ----------------------------------------------------------------------------
def _full_spec(shape):
    nd = len(shape)
    return pl.BlockSpec(tuple(shape), lambda i, _nd=nd: (0,) * _nd)


def fused_transformer(emb, pe, layer_ws, *, nhead, d_model):
    """emb: (B,S,D) f32 already-gathered embeddings; layer_ws: tuple of stacked,
    host-pre-transposed per-layer weights (leading axis = layer)."""
    B, S, D = emb.shape
    L = layer_ws[0].shape[0]
    args = (emb, pe) + tuple(layer_ws)
    kern = functools.partial(fused_transformer_kernel, nlayers=L, nhead=nhead,
                             scale=math.sqrt(d_model))
    return pl.pallas_call(
        kern,
        out_shape=jax.ShapeDtypeStruct((B, D), jnp.float32),
        grid=(1,),
        in_specs=[_full_spec(a.shape) for a in args],
        out_specs=pl.BlockSpec((B, D), lambda i: (0, 0)),
        compiler_params=pltpu.CompilerParams(
            dimension_semantics=("arbitrary",)),
    )(*args)


def transformer_forward(src_ids, prep, *, d_model, nhead):
    # Embedding gather is glue (data-dependent row lookup) done in plain JAX;
    # XLA fuses it, everything else runs in the single fused Pallas kernel.
    emb = jnp.take(prep["embedding"], src_ids, axis=0)          # (B, S, D) f32
    layer_ws = (prep["wqkv"], prep["bqkv"], prep["wout"], prep["bout"],
                prep["ln1_g"], prep["ln1_b"],
                prep["w1"], prep["b1"], prep["w2"], prep["b2"],
                prep["ln2_g"], prep["ln2_b"])
    return fused_transformer(emb, prep["pe"], layer_ws,
                             nhead=nhead, d_model=d_model)


# ----------------------------------------------------------------------------
# Deterministic parameter construction (synthetic; PyTorch-style layouts)
# ----------------------------------------------------------------------------
def sinusoidal_pe(seq_len, d_model):
    pos = jnp.arange(seq_len, dtype=jnp.float32)[:, None]
    div = jnp.exp(jnp.arange(0, d_model, 2, dtype=jnp.float32)
                  * (-math.log(10000.0) / d_model))
    pe = jnp.zeros((seq_len, d_model), jnp.float32)
    pe = pe.at[:, 0::2].set(jnp.sin(pos * div))
    pe = pe.at[:, 1::2].set(jnp.cos(pos * div))
    return pe


def make_params(key, *, ntoken, d_model, nhead, d_hid, nlayers, seq_len):
    """Weights in PyTorch layout: Linear.weight is (out_features, in_features)."""
    keys = jax.random.split(key, 1 + 6 * nlayers)
    emb_std = math.sqrt(2.0 / (ntoken + d_model))               # xavier_normal_
    embedding = jax.random.normal(keys[0], (ntoken, d_model), jnp.float32) * emb_std

    layers = []
    for li in range(nlayers):
        k = keys[1 + 6 * li: 1 + 6 * (li + 1)]
        layers.append(dict(
            in_w=jax.random.normal(k[0], (3 * d_model, d_model), jnp.float32) * 0.05,
            in_b=jnp.zeros((3 * d_model,), jnp.float32),
            out_w=jax.random.normal(k[1], (d_model, d_model), jnp.float32) * 0.05,
            out_b=jnp.zeros((d_model,), jnp.float32),
            ln1_g=jnp.ones((d_model,), jnp.float32),
            ln1_b=jnp.zeros((d_model,), jnp.float32),
            w1=jax.random.normal(k[2], (d_hid, d_model), jnp.float32) * 0.05,
            b1=jax.random.normal(k[3], (d_hid,), jnp.float32) * 0.01,
            w2=jax.random.normal(k[4], (d_model, d_hid), jnp.float32) * 0.05,
            b2=jax.random.normal(k[5], (d_model,), jnp.float32) * 0.01,
            ln2_g=jnp.ones((d_model,), jnp.float32),
            ln2_b=jnp.zeros((d_model,), jnp.float32),
        ))
    return {"embedding": embedding, "pe": sinusoidal_pe(seq_len, d_model),
            "layers": layers}


def prepare_params(params, matmul_dtype=jnp.bfloat16):
    """Host-side one-time prep: transpose matmul weights to (in, out), stack all
    layers along a leading axis, cast matmul weights to bf16 (f32 elsewhere)."""
    def stk(fn):
        return jnp.stack([fn(l) for l in params["layers"]], axis=0)

    return {
        "embedding": params["embedding"],
        "pe": params["pe"],
        "wqkv": stk(lambda l: l["in_w"].T).astype(matmul_dtype),    # (L, D, 3D)
        "bqkv": stk(lambda l: l["in_b"][None, :]),                  # (L, 1, 3D)
        "wout": stk(lambda l: l["out_w"].T).astype(matmul_dtype),   # (L, D, D)
        "bout": stk(lambda l: l["out_b"][None, :]),
        "ln1_g": stk(lambda l: l["ln1_g"][None, :]),
        "ln1_b": stk(lambda l: l["ln1_b"][None, :]),
        "w1": stk(lambda l: l["w1"].T).astype(matmul_dtype),        # (L, D, d_hid)
        "b1": stk(lambda l: l["b1"][None, :]),
        "w2": stk(lambda l: l["w2"].T).astype(matmul_dtype),        # (L, d_hid, D)
        "b2": stk(lambda l: l["b2"][None, :]),
        "ln2_g": stk(lambda l: l["ln2_g"][None, :]),
        "ln2_b": stk(lambda l: l["ln2_b"][None, :]),
    }


# ----------------------------------------------------------------------------
if __name__ == "__main__":
    ntoken, d_model, nhead, d_hid, nlayers = 50, 32, 4, 64, 2
    B, S = 2, 8

    key = jax.random.PRNGKey(0)
    k_param, k_src = jax.random.split(key)
    params = make_params(k_param, ntoken=ntoken, d_model=d_model, nhead=nhead,
                         d_hid=d_hid, nlayers=nlayers, seq_len=S)
    prep = prepare_params(params)
    src = jax.random.randint(k_src, (B, S), 0, ntoken, dtype=jnp.int32)

    fwd = jax.jit(functools.partial(transformer_forward,
                                    d_model=d_model, nhead=nhead))
    out = fwd(src, prep)
    out = jax.block_until_ready(out)
    assert out.shape == (B, d_model), out.shape
    assert jnp.all(jnp.isfinite(out))
    print("KERNEL_OK")
</pallas_src>

<mosaic_0001>
module attributes {stable_mosaic.version = 11 : i64} {
  func.func @fused_transformer_kernel(%arg0: i32, %arg1: memref<2x8x32xf32, #tpu.memory_space<vmem>>, %arg2: memref<8x32xf32, #tpu.memory_space<vmem>>, %arg3: memref<2x32x96xbf16, #tpu.memory_space<vmem>>, %arg4: memref<2x1x96xf32, #tpu.memory_space<vmem>>, %arg5: memref<2x32x32xbf16, #tpu.memory_space<vmem>>, %arg6: memref<2x1x32xf32, #tpu.memory_space<vmem>>, %arg7: memref<2x1x32xf32, #tpu.memory_space<vmem>>, %arg8: memref<2x1x32xf32, #tpu.memory_space<vmem>>, %arg9: memref<2x32x64xbf16, #tpu.memory_space<vmem>>, %arg10: memref<2x1x64xf32, #tpu.memory_space<vmem>>, %arg11: memref<2x64x32xbf16, #tpu.memory_space<vmem>>, %arg12: memref<2x1x32xf32, #tpu.memory_space<vmem>>, %arg13: memref<2x1x32xf32, #tpu.memory_space<vmem>>, %arg14: memref<2x1x32xf32, #tpu.memory_space<vmem>>, %arg15: memref<2x32xf32, #tpu.memory_space<vmem>>) attributes {dimension_semantics = [#tpu.dimension_semantics<arbitrary>], iteration_bounds = array<i64: 1>, scalar_prefetch = 0 : i64, scratch_operands = 0 : i64, tpu.core_type = #tpu.core_type<tc>, window_params = [{pipeline_mode = #tpu.pipeline_mode<synchronous>, transform_indices = @transform_0, window_bounds = array<i64: 2, 8, 32>}, {pipeline_mode = #tpu.pipeline_mode<synchronous>, transform_indices = @transform_1, window_bounds = array<i64: 8, 32>}, {pipeline_mode = #tpu.pipeline_mode<synchronous>, transform_indices = @transform_2, window_bounds = array<i64: 2, 32, 96>}, {pipeline_mode = #tpu.pipeline_mode<synchronous>, transform_indices = @transform_3, window_bounds = array<i64: 2, 1, 96>}, {pipeline_mode = #tpu.pipeline_mode<synchronous>, transform_indices = @transform_4, window_bounds = array<i64: 2, 32, 32>}, {pipeline_mode = #tpu.pipeline_mode<synchronous>, transform_indices = @transform_5, window_bounds = array<i64: 2, 1, 32>}, {pipeline_mode = #tpu.pipeline_mode<synchronous>, transform_indices = @transform_6, window_bounds = array<i64: 2, 1, 32>}, {pipeline_mode = #tpu.pipeline_mode<synchronous>, transform_indices = @transform_7, window_bounds = array<i64: 2, 1, 32>}, {pipeline_mode = #tpu.pipeline_mode<synchronous>, transform_indices = @transform_8, window_bounds = array<i64: 2, 32, 64>}, {pipeline_mode = #tpu.pipeline_mode<synchronous>, transform_indices = @transform_9, window_bounds = array<i64: 2, 1, 64>}, {pipeline_mode = #tpu.pipeline_mode<synchronous>, transform_indices = @transform_10, window_bounds = array<i64: 2, 64, 32>}, {pipeline_mode = #tpu.pipeline_mode<synchronous>, transform_indices = @transform_11, window_bounds = array<i64: 2, 1, 32>}, {pipeline_mode = #tpu.pipeline_mode<synchronous>, transform_indices = @transform_12, window_bounds = array<i64: 2, 1, 32>}, {pipeline_mode = #tpu.pipeline_mode<synchronous>, transform_indices = @transform_13, window_bounds = array<i64: 2, 1, 32>}, {pipeline_mode = #tpu.pipeline_mode<synchronous>, transform_indices = @transform_14, window_bounds = array<i64: 2, 32>}]} {
    %c0 = arith.constant 0 : index
    %c0_0 = arith.constant 0 : index
    %c0_1 = arith.constant 0 : index
    %0 = vector.load %arg1[%c0, %c0_0, %c0_1] : memref<2x8x32xf32, #tpu.memory_space<vmem>>, vector<2x8x32xf32>
    %cst = arith.constant 5.65685415 : f32
    %1 = vector.broadcast %cst : f32 to vector<2x8x32xf32>
    %2 = arith.mulf %0, %1 : vector<2x8x32xf32>
    %c0_2 = arith.constant 0 : index
    %c0_3 = arith.constant 0 : index
    %3 = vector.load %arg2[%c0_2, %c0_3] : memref<8x32xf32, #tpu.memory_space<vmem>>, vector<8x32xf32>
    %4 = vector.shape_cast %3 : vector<8x32xf32> to vector<1x8x32xf32>
    %5 = vector.broadcast %4 : vector<1x8x32xf32> to vector<2x8x32xf32>
    %6 = arith.addf %2, %5 : vector<2x8x32xf32>
    %7 = vector.shape_cast %6 : vector<2x8x32xf32> to vector<16x32xf32>
    %8 = arith.truncf %7 : vector<16x32xf32> to vector<16x32xbf16>
    %c0_4 = arith.constant 0 : index
    %c0_5 = arith.constant 0 : index
    %c0_6 = arith.constant 0 : index
    %9 = vector.load %arg3[%c0_4, %c0_5, %c0_6] : memref<2x32x96xbf16, #tpu.memory_space<vmem>>, vector<1x32x96xbf16>
    %10 = vector.shape_cast %9 : vector<1x32x96xbf16> to vector<32x96xbf16>
    %cst_7 = arith.constant dense<0.000000e+00> : vector<16x96xf32>
    %11 = tpu.matmul %8, %10, %cst_7 {dimension_numbers = #tpu.dot_dimension_numbers<[1], [0], [0], [1], [0, 0, 1, 1], [], []>} : vector<16x32xbf16>, vector<32x96xbf16>, vector<16x96xf32> -> vector<16x96xf32>
    %c0_8 = arith.constant 0 : index
    %c0_9 = arith.constant 0 : index
    %c0_10 = arith.constant 0 : index
    %12 = vector.load %arg4[%c0_8, %c0_9, %c0_10] : memref<2x1x96xf32, #tpu.memory_space<vmem>>, vector<1x1x96xf32>
    %13 = vector.shape_cast %12 : vector<1x1x96xf32> to vector<1x96xf32>
    %14 = vector.broadcast %13 : vector<1x96xf32> to vector<16x96xf32>
    %15 = arith.addf %11, %14 : vector<16x96xf32>
    %16 = vector.extract_strided_slice %15 {offsets = [0, 0], sizes = [16, 8], strides = [1, 1]} : vector<16x96xf32> to vector<16x8xf32>
    %17 = vector.shape_cast %16 : vector<16x8xf32> to vector<2x8x8xf32>
    %18 = vector.extract_strided_slice %15 {offsets = [0, 8], sizes = [16, 8], strides = [1, 1]} : vector<16x96xf32> to vector<16x8xf32>
    %19 = vector.shape_cast %18 : vector<16x8xf32> to vector<2x8x8xf32>
    %20 = vector.extract_strided_slice %15 {offsets = [0, 16], sizes = [16, 8], strides = [1, 1]} : vector<16x96xf32> to vector<16x8xf32>
    %21 = vector.shape_cast %20 : vector<16x8xf32> to vector<2x8x8xf32>
    %22 = vector.extract_strided_slice %15 {offsets = [0, 24], sizes = [16, 8], strides = [1, 1]} : vector<16x96xf32> to vector<16x8xf32>
    %23 = vector.shape_cast %22 : vector<16x8xf32> to vector<2x8x8xf32>
    %24 = tpu.concatenate %17, %19, %21, %23 in 0 : vector<2x8x8xf32>, vector<2x8x8xf32>, vector<2x8x8xf32>, vector<2x8x8xf32> -> vector<8x8x8xf32>
    %25 = vector.extract_strided_slice %15 {offsets = [0, 32], sizes = [16, 8], strides = [1, 1]} : vector<16x96xf32> to vector<16x8xf32>
    %26 = vector.shape_cast %25 : vector<16x8xf32> to vector<2x8x8xf32>
    %27 = vector.extract_strided_slice %15 {offsets = [0, 40], sizes = [16, 8], strides = [1, 1]} : vector<16x96xf32> to vector<16x8xf32>
    %28 = vector.shape_cast %27 : vector<16x8xf32> to vector<2x8x8xf32>
    %29 = vector.extract_strided_slice %15 {offsets = [0, 48], sizes = [16, 8], strides = [1, 1]} : vector<16x96xf32> to vector<16x8xf32>
    %30 = vector.shape_cast %29 : vector<16x8xf32> to vector<2x8x8xf32>
    %31 = vector.extract_strided_slice %15 {offsets = [0, 56], sizes = [16, 8], strides = [1, 1]} : vector<16x96xf32> to vector<16x8xf32>
    %32 = vector.shape_cast %31 : vector<16x8xf32> to vector<2x8x8xf32>
    %33 = tpu.concatenate %26, %28, %30, %32 in 0 : vector<2x8x8xf32>, vector<2x8x8xf32>, vector<2x8x8xf32>, vector<2x8x8xf32> -> vector<8x8x8xf32>
    %34 = vector.extract_strided_slice %15 {offsets = [0, 64], sizes = [16, 8], strides = [1, 1]} : vector<16x96xf32> to vector<16x8xf32>
    %35 = vector.shape_cast %34 : vector<16x8xf32> to vector<2x8x8xf32>
    %36 = vector.extract_strided_slice %15 {offsets = [0, 72], sizes = [16, 8], strides = [1, 1]} : vector<16x96xf32> to vector<16x8xf32>
    %37 = vector.shape_cast %36 : vector<16x8xf32> to vector<2x8x8xf32>
    %38 = vector.extract_strided_slice %15 {offsets = [0, 80], sizes = [16, 8], strides = [1, 1]} : vector<16x96xf32> to vector<16x8xf32>
    %39 = vector.shape_cast %38 : vector<16x8xf32> to vector<2x8x8xf32>
    %40 = vector.extract_strided_slice %15 {offsets = [0, 88], sizes = [16, 8], strides = [1, 1]} : vector<16x96xf32> to vector<16x8xf32>
    %41 = vector.shape_cast %40 : vector<16x8xf32> to vector<2x8x8xf32>
    %42 = tpu.concatenate %35, %37, %39, %41 in 0 : vector<2x8x8xf32>, vector<2x8x8xf32>, vector<2x8x8xf32>, vector<2x8x8xf32> -> vector<8x8x8xf32>
    %43 = arith.truncf %24 : vector<8x8x8xf32> to vector<8x8x8xbf16>
    %44 = arith.truncf %33 : vector<8x8x8xf32> to vector<8x8x8xbf16>
    %45 = arith.truncf %42 : vector<8x8x8xf32> to vector<8x8x8xbf16>
    "tpu.trace_start"() <{level = 10 : i32, message = "zqd,zkd->zqk"}> : () -> ()
    %cst_11 = arith.constant dense<0.000000e+00> : vector<8x8x8xf32>
    %46 = tpu.matmul %43, %44, %cst_11 {dimension_numbers = #tpu.dot_dimension_numbers<[2], [2], [1], [1], [0, 0, 0, 1, 1, 1], [0], [0]>} : vector<8x8x8xbf16>, vector<8x8x8xbf16>, vector<8x8x8xf32> -> vector<8x8x8xf32>
    "tpu.trace_stop"() : () -> ()
    %cst_12 = arith.constant 0.353553385 : f32
    %47 = vector.broadcast %cst_12 : f32 to vector<8x8x8xf32>
    %48 = arith.mulf %46, %47 : vector<8x8x8xf32>
    %cst_13 = arith.constant dense<0xFF800000> : vector<8x8xf32>
    %49 = vector.multi_reduction <maximumf>, %48, %cst_13 [2] : vector<8x8x8xf32> to vector<8x8xf32>
    %50 = vector.shape_cast %49 : vector<8x8xf32> to vector<8x8x1xf32>
    %51 = vector.broadcast %50 : vector<8x8x1xf32> to vector<8x8x8xf32>
    %52 = arith.subf %48, %51 : vector<8x8x8xf32>
    %53 = math.exp %52 : vector<8x8x8xf32>
    %cst_14 = arith.constant dense<0.000000e+00> : vector<8x8xf32>
    %54 = vector.multi_reduction <add>, %53, %cst_14 [2] : vector<8x8x8xf32> to vector<8x8xf32>
    %55 = vector.shape_cast %54 : vector<8x8xf32> to vector<8x8x1xf32>
    %56 = tpu.reciprocal %55 {approx = true} : vector<8x8x1xf32> -> vector<8x8x1xf32>
    %57 = vector.broadcast %56 : vector<8x8x1xf32> to vector<8x8x8xf32>
    %58 = arith.mulf %53, %57 : vector<8x8x8xf32>
    %59 = arith.truncf %58 : vector<8x8x8xf32> to vector<8x8x8xbf16>
    "tpu.trace_start"() <{level = 10 : i32, message = "zqk,zkd->zqd"}> : () -> ()
    %cst_15 = arith.constant dense<0.000000e+00> : vector<8x8x8xf32>
    %60 = tpu.matmul %59, %45, %cst_15 {dimension_numbers = #tpu.dot_dimension_numbers<[2], [1], [1], [2], [0, 0, 0, 1, 1, 2], [0], [0]>} : vector<8x8x8xbf16>, vector<8x8x8xbf16>, vector<8x8x8xf32> -> vector<8x8x8xf32>
    "tpu.trace_stop"() : () -> ()
    %61 = vector.extract_strided_slice %60 {offsets = [0, 0, 0], sizes = [2, 8, 8], strides = [1, 1, 1]} : vector<8x8x8xf32> to vector<2x8x8xf32>
    %62 = vector.shape_cast %61 : vector<2x8x8xf32> to vector<16x8xf32>
    %63 = vector.extract_strided_slice %60 {offsets = [2, 0, 0], sizes = [2, 8, 8], strides = [1, 1, 1]} : vector<8x8x8xf32> to vector<2x8x8xf32>
    %64 = vector.shape_cast %63 : vector<2x8x8xf32> to vector<16x8xf32>
    %65 = vector.extract_strided_slice %60 {offsets = [4, 0, 0], sizes = [2, 8, 8], strides = [1, 1, 1]} : vector<8x8x8xf32> to vector<2x8x8xf32>
    %66 = vector.shape_cast %65 : vector<2x8x8xf32> to vector<16x8xf32>
    %67 = vector.extract_strided_slice %60 {offsets = [6, 0, 0], sizes = [2, 8, 8], strides = [1, 1, 1]} : vector<8x8x8xf32> to vector<2x8x8xf32>
    %68 = vector.shape_cast %67 : vector<2x8x8xf32> to vector<16x8xf32>
    %69 = tpu.concatenate %62, %64, %66, %68 in 1 : vector<16x8xf32>, vector<16x8xf32>, vector<16x8xf32>, vector<16x8xf32> -> vector<16x32xf32>
    %70 = arith.truncf %69 : vector<16x32xf32> to vector<16x32xbf16>
    %c0_16 = arith.constant 0 : index
    %c0_17 = arith.constant 0 : index
    %c0_18 = arith.constant 0 : index
    %71 = vector.load %arg5[%c0_16, %c0_17, %c0_18] : memref<2x32x32xbf16, #tpu.memory_space<vmem>>, vector<1x32x32xbf16>
    %72 = vector.shape_cast %71 : vector<1x32x32xbf16> to vector<32x32xbf16>
    %cst_19 = arith.constant dense<0.000000e+00> : vector<16x32xf32>
    %73 = tpu.matmul %70, %72, %cst_19 {dimension_numbers = #tpu.dot_dimension_numbers<[1], [0], [0], [1], [0, 0, 1, 1], [], []>} : vector<16x32xbf16>, vector<32x32xbf16>, vector<16x32xf32> -> vector<16x32xf32>
    %c0_20 = arith.constant 0 : index
    %c0_21 = arith.constant 0 : index
    %c0_22 = arith.constant 0 : index
    %74 = vector.load %arg6[%c0_20, %c0_21, %c0_22] : memref<2x1x32xf32, #tpu.memory_space<vmem>>, vector<1x1x32xf32>
    %75 = vector.shape_cast %74 : vector<1x1x32xf32> to vector<1x32xf32>
    %76 = vector.broadcast %75 : vector<1x32xf32> to vector<16x32xf32>
    %77 = arith.addf %73, %76 : vector<16x32xf32>
    %78 = arith.addf %7, %77 : vector<16x32xf32>
    %cst_23 = arith.constant dense<0.000000e+00> : vector<16xf32>
    %79 = vector.multi_reduction <add>, %78, %cst_23 [1] : vector<16x32xf32> to vector<16xf32>
    %80 = vector.shape_cast %79 : vector<16xf32> to vector<16x1xf32>
    %cst_24 = arith.constant 3.200000e+01 : f32
    %81 = vector.broadcast %cst_24 : f32 to vector<16x1xf32>
    %82 = arith.divf %80, %81 : vector<16x1xf32>
    %83 = vector.broadcast %82 : vector<16x1xf32> to vector<16x32xf32>
    %84 = arith.subf %78, %83 : vector<16x32xf32>
    %85 = arith.mulf %84, %84 : vector<16x32xf32>
    %cst_25 = arith.constant dense<0.000000e+00> : vector<16xf32>
    %86 = vector.multi_reduction <add>, %85, %cst_25 [1] : vector<16x32xf32> to vector<16xf32>
    %87 = vector.shape_cast %86 : vector<16xf32> to vector<16x1xf32>
    %cst_26 = arith.constant 3.200000e+01 : f32
    %88 = vector.broadcast %cst_26 : f32 to vector<16x1xf32>
    %89 = arith.divf %87, %88 : vector<16x1xf32>
    %90 = vector.broadcast %82 : vector<16x1xf32> to vector<16x32xf32>
    %91 = arith.subf %78, %90 : vector<16x32xf32>
    %cst_27 = arith.constant 9.99999974E-6 : f32
    %92 = vector.broadcast %cst_27 : f32 to vector<16x1xf32>
    %93 = arith.addf %89, %92 : vector<16x1xf32>
    %94 = math.rsqrt %93 : vector<16x1xf32>
    %95 = vector.broadcast %94 : vector<16x1xf32> to vector<16x32xf32>
    %96 = arith.mulf %91, %95 : vector<16x32xf32>
    %c0_28 = arith.constant 0 : index
    %c0_29 = arith.constant 0 : index
    %c0_30 = arith.constant 0 : index
    %97 = vector.load %arg7[%c0_28, %c0_29, %c0_30] : memref<2x1x32xf32, #tpu.memory_space<vmem>>, vector<1x1x32xf32>
    %98 = vector.shape_cast %97 : vector<1x1x32xf32> to vector<1x32xf32>
    %99 = vector.broadcast %98 : vector<1x32xf32> to vector<16x32xf32>
    %100 = arith.mulf %96, %99 : vector<16x32xf32>
    %c0_31 = arith.constant 0 : index
    %c0_32 = arith.constant 0 : index
    %c0_33 = arith.constant 0 : index
    %101 = vector.load %arg8[%c0_31, %c0_32, %c0_33] : memref<2x1x32xf32, #tpu.memory_space<vmem>>, vector<1x1x32xf32>
    %102 = vector.shape_cast %101 : vector<1x1x32xf32> to vector<1x32xf32>
    %103 = vector.broadcast %102 : vector<1x32xf32> to vector<16x32xf32>
    %104 = arith.addf %100, %103 : vector<16x32xf32>
    %105 = arith.truncf %104 : vector<16x32xf32> to vector<16x32xbf16>
    %c0_34 = arith.constant 0 : index
    %c0_35 = arith.constant 0 : index
    %c0_36 = arith.constant 0 : index
    %106 = vector.load %arg9[%c0_34, %c0_35, %c0_36] : memref<2x32x64xbf16, #tpu.memory_space<vmem>>, vector<1x32x64xbf16>
    %107 = vector.shape_cast %106 : vector<1x32x64xbf16> to vector<32x64xbf16>
    %cst_37 = arith.constant dense<0.000000e+00> : vector<16x64xf32>
    %108 = tpu.matmul %105, %107, %cst_37 {dimension_numbers = #tpu.dot_dimension_numbers<[1], [0], [0], [1], [0, 0, 1, 1], [], []>} : vector<16x32xbf16>, vector<32x64xbf16>, vector<16x64xf32> -> vector<16x64xf32>
    %c0_38 = arith.constant 0 : index
    %c0_39 = arith.constant 0 : index
    %c0_40 = arith.constant 0 : index
    %109 = vector.load %arg10[%c0_38, %c0_39, %c0_40] : memref<2x1x64xf32, #tpu.memory_space<vmem>>, vector<1x1x64xf32>
    %110 = vector.shape_cast %109 : vector<1x1x64xf32> to vector<1x64xf32>
    %111 = vector.broadcast %110 : vector<1x64xf32> to vector<16x64xf32>
    %112 = arith.addf %108, %111 : vector<16x64xf32>
    %cst_41 = arith.constant 0.000000e+00 : f32
    %113 = vector.broadcast %cst_41 : f32 to vector<16x64xf32>
    %114 = arith.maximumf %112, %113 : vector<16x64xf32>
    %115 = arith.truncf %114 : vector<16x64xf32> to vector<16x64xbf16>
    %c0_42 = arith.constant 0 : index
    %c0_43 = arith.constant 0 : index
    %c0_44 = arith.constant 0 : index
    %116 = vector.load %arg11[%c0_42, %c0_43, %c0_44] : memref<2x64x32xbf16, #tpu.memory_space<vmem>>, vector<1x64x32xbf16>
    %117 = vector.shape_cast %116 : vector<1x64x32xbf16> to vector<64x32xbf16>
    %cst_45 = arith.constant dense<0.000000e+00> : vector<16x32xf32>
    %118 = tpu.matmul %115, %117, %cst_45 {dimension_numbers = #tpu.dot_dimension_numbers<[1], [0], [0], [1], [0, 0, 1, 1], [], []>} : vector<16x64xbf16>, vector<64x32xbf16>, vector<16x32xf32> -> vector<16x32xf32>
    %c0_46 = arith.constant 0 : index
    %c0_47 = arith.constant 0 : index
    %c0_48 = arith.constant 0 : index
    %119 = vector.load %arg12[%c0_46, %c0_47, %c0_48] : memref<2x1x32xf32, #tpu.memory_space<vmem>>, vector<1x1x32xf32>
    %120 = vector.shape_cast %119 : vector<1x1x32xf32> to vector<1x32xf32>
    %121 = vector.broadcast %120 : vector<1x32xf32> to vector<16x32xf32>
    %122 = arith.addf %118, %121 : vector<16x32xf32>
    %123 = arith.addf %104, %122 : vector<16x32xf32>
    %cst_49 = arith.constant dense<0.000000e+00> : vector<16xf32>
    %124 = vector.multi_reduction <add>, %123, %cst_49 [1] : vector<16x32xf32> to vector<16xf32>
    %125 = vector.shape_cast %124 : vector<16xf32> to vector<16x1xf32>
    %cst_50 = arith.constant 3.200000e+01 : f32
    %126 = vector.broadcast %cst_50 : f32 to vector<16x1xf32>
    %127 = arith.divf %125, %126 : vector<16x1xf32>
    %128 = vector.broadcast %127 : vector<16x1xf32> to vector<16x32xf32>
    %129 = arith.subf %123, %128 : vector<16x32xf32>
    %130 = arith.mulf %129, %129 : vector<16x32xf32>
    %cst_51 = arith.constant dense<0.000000e+00> : vector<16xf32>
    %131 = vector.multi_reduction <add>, %130, %cst_51 [1] : vector<16x32xf32> to vector<16xf32>
    %132 = vector.shape_cast %131 : vector<16xf32> to vector<16x1xf32>
    %cst_52 = arith.constant 3.200000e+01 : f32
    %133 = vector.broadcast %cst_52 : f32 to vector<16x1xf32>
    %134 = arith.divf %132, %133 : vector<16x1xf32>
    %135 = vector.broadcast %127 : vector<16x1xf32> to vector<16x32xf32>
    %136 = arith.subf %123, %135 : vector<16x32xf32>
    %cst_53 = arith.constant 9.99999974E-6 : f32
    %137 = vector.broadcast %cst_53 : f32 to vector<16x1xf32>
    %138 = arith.addf %134, %137 : vector<16x1xf32>
    %139 = math.rsqrt %138 : vector<16x1xf32>
    %140 = vector.broadcast %139 : vector<16x1xf32> to vector<16x32xf32>
    %141 = arith.mulf %136, %140 : vector<16x32xf32>
    %c0_54 = arith.constant 0 : index
    %c0_55 = arith.constant 0 : index
    %c0_56 = arith.constant 0 : index
    %142 = vector.load %arg13[%c0_54, %c0_55, %c0_56] : memref<2x1x32xf32, #tpu.memory_space<vmem>>, vector<1x1x32xf32>
    %143 = vector.shape_cast %142 : vector<1x1x32xf32> to vector<1x32xf32>
    %144 = vector.broadcast %143 : vector<1x32xf32> to vector<16x32xf32>
    %145 = arith.mulf %141, %144 : vector<16x32xf32>
    %c0_57 = arith.constant 0 : index
    %c0_58 = arith.constant 0 : index
    %c0_59 = arith.constant 0 : index
    %146 = vector.load %arg14[%c0_57, %c0_58, %c0_59] : memref<2x1x32xf32, #tpu.memory_space<vmem>>, vector<1x1x32xf32>
    %147 = vector.shape_cast %146 : vector<1x1x32xf32> to vector<1x32xf32>
    %148 = vector.broadcast %147 : vector<1x32xf32> to vector<16x32xf32>
    %149 = arith.addf %145, %148 : vector<16x32xf32>
    %150 = arith.truncf %149 : vector<16x32xf32> to vector<16x32xbf16>
    %c1 = arith.constant 1 : index
    %c0_60 = arith.constant 0 : index
    %c0_61 = arith.constant 0 : index
    %151 = vector.load %arg3[%c1, %c0_60, %c0_61] : memref<2x32x96xbf16, #tpu.memory_space<vmem>>, vector<1x32x96xbf16>
    %152 = vector.shape_cast %151 : vector<1x32x96xbf16> to vector<32x96xbf16>
    %cst_62 = arith.constant dense<0.000000e+00> : vector<16x96xf32>
    %153 = tpu.matmul %150, %152, %cst_62 {dimension_numbers = #tpu.dot_dimension_numbers<[1], [0], [0], [1], [0, 0, 1, 1], [], []>} : vector<16x32xbf16>, vector<32x96xbf16>, vector<16x96xf32> -> vector<16x96xf32>
    %c1_63 = arith.constant 1 : index
    %c0_64 = arith.constant 0 : index
    %c0_65 = arith.constant 0 : index
    %154 = vector.load %arg4[%c1_63, %c0_64, %c0_65] : memref<2x1x96xf32, #tpu.memory_space<vmem>>, vector<1x1x96xf32>
    %155 = vector.shape_cast %154 : vector<1x1x96xf32> to vector<1x96xf32>
    %156 = vector.broadcast %155 : vector<1x96xf32> to vector<16x96xf32>
    %157 = arith.addf %153, %156 : vector<16x96xf32>
    %158 = vector.extract_strided_slice %157 {offsets = [0, 0], sizes = [16, 8], strides = [1, 1]} : vector<16x96xf32> to vector<16x8xf32>
    %159 = vector.shape_cast %158 : vector<16x8xf32> to vector<2x8x8xf32>
    %160 = vector.extract_strided_slice %157 {offsets = [0, 8], sizes = [16, 8], strides = [1, 1]} : vector<16x96xf32> to vector<16x8xf32>
    %161 = vector.shape_cast %160 : vector<16x8xf32> to vector<2x8x8xf32>
    %162 = vector.extract_strided_slice %157 {offsets = [0, 16], sizes = [16, 8], strides = [1, 1]} : vector<16x96xf32> to vector<16x8xf32>
    %163 = vector.shape_cast %162 : vector<16x8xf32> to vector<2x8x8xf32>
    %164 = vector.extract_strided_slice %157 {offsets = [0, 24], sizes = [16, 8], strides = [1, 1]} : vector<16x96xf32> to vector<16x8xf32>
    %165 = vector.shape_cast %164 : vector<16x8xf32> to vector<2x8x8xf32>
    %166 = tpu.concatenate %159, %161, %163, %165 in 0 : vector<2x8x8xf32>, vector<2x8x8xf32>, vector<2x8x8xf32>, vector<2x8x8xf32> -> vector<8x8x8xf32>
    %167 = vector.extract_strided_slice %157 {offsets = [0, 32], sizes = [16, 8], strides = [1, 1]} : vector<16x96xf32> to vector<16x8xf32>
    %168 = vector.shape_cast %167 : vector<16x8xf32> to vector<2x8x8xf32>
    %169 = vector.extract_strided_slice %157 {offsets = [0, 40], sizes = [16, 8], strides = [1, 1]} : vector<16x96xf32> to vector<16x8xf32>
    %170 = vector.shape_cast %169 : vector<16x8xf32> to vector<2x8x8xf32>
    %171 = vector.extract_strided_slice %157 {offsets = [0, 48], sizes = [16, 8], strides = [1, 1]} : vector<16x96xf32> to vector<16x8xf32>
    %172 = vector.shape_cast %171 : vector<16x8xf32> to vector<2x8x8xf32>
    %173 = vector.extract_strided_slice %157 {offsets = [0, 56], sizes = [16, 8], strides = [1, 1]} : vector<16x96xf32> to vector<16x8xf32>
    %174 = vector.shape_cast %173 : vector<16x8xf32> to vector<2x8x8xf32>
    %175 = tpu.concatenate %168, %170, %172, %174 in 0 : vector<2x8x8xf32>, vector<2x8x8xf32>, vector<2x8x8xf32>, vector<2x8x8xf32> -> vector<8x8x8xf32>
    %176 = vector.extract_strided_slice %157 {offsets = [0, 64], sizes = [16, 8], strides = [1, 1]} : vector<16x96xf32> to vector<16x8xf32>
    %177 = vector.shape_cast %176 : vector<16x8xf32> to vector<2x8x8xf32>
    %178 = vector.extract_strided_slice %157 {offsets = [0, 72], sizes = [16, 8], strides = [1, 1]} : vector<16x96xf32> to vector<16x8xf32>
    %179 = vector.shape_cast %178 : vector<16x8xf32> to vector<2x8x8xf32>
    %180 = vector.extract_strided_slice %157 {offsets = [0, 80], sizes = [16, 8], strides = [1, 1]} : vector<16x96xf32> to vector<16x8xf32>
    %181 = vector.shape_cast %180 : vector<16x8xf32> to vector<2x8x8xf32>
    %182 = vector.extract_strided_slice %157 {offsets = [0, 88], sizes = [16, 8], strides = [1, 1]} : vector<16x96xf32> to vector<16x8xf32>
    %183 = vector.shape_cast %182 : vector<16x8xf32> to vector<2x8x8xf32>
    %184 = tpu.concatenate %177, %179, %181, %183 in 0 : vector<2x8x8xf32>, vector<2x8x8xf32>, vector<2x8x8xf32>, vector<2x8x8xf32> -> vector<8x8x8xf32>
    %185 = arith.truncf %166 : vector<8x8x8xf32> to vector<8x8x8xbf16>
    %186 = arith.truncf %175 : vector<8x8x8xf32> to vector<8x8x8xbf16>
    %187 = arith.truncf %184 : vector<8x8x8xf32> to vector<8x8x8xbf16>
    "tpu.trace_start"() <{level = 10 : i32, message = "zqd,zkd->zqk"}> : () -> ()
    %cst_66 = arith.constant dense<0.000000e+00> : vector<8x8x8xf32>
    %188 = tpu.matmul %185, %186, %cst_66 {dimension_numbers = #tpu.dot_dimension_numbers<[2], [2], [1], [1], [0, 0, 0, 1, 1, 1], [0], [0]>} : vector<8x8x8xbf16>, vector<8x8x8xbf16>, vector<8x8x8xf32> -> vector<8x8x8xf32>
    "tpu.trace_stop"() : () -> ()
    %cst_67 = arith.constant 0.353553385 : f32
    %189 = vector.broadcast %cst_67 : f32 to vector<8x8x8xf32>
    %190 = arith.mulf %188, %189 : vector<8x8x8xf32>
    %cst_68 = arith.constant dense<0xFF800000> : vector<8x8xf32>
    %191 = vector.multi_reduction <maximumf>, %190, %cst_68 [2] : vector<8x8x8xf32> to vector<8x8xf32>
    %192 = vector.shape_cast %191 : vector<8x8xf32> to vector<8x8x1xf32>
    %193 = vector.broadcast %192 : vector<8x8x1xf32> to vector<8x8x8xf32>
    %194 = arith.subf %190, %193 : vector<8x8x8xf32>
    %195 = math.exp %194 : vector<8x8x8xf32>
    %cst_69 = arith.constant dense<0.000000e+00> : vector<8x8xf32>
    %196 = vector.multi_reduction <add>, %195, %cst_69 [2] : vector<8x8x8xf32> to vector<8x8xf32>
    %197 = vector.shape_cast %196 : vector<8x8xf32> to vector<8x8x1xf32>
    %198 = tpu.reciprocal %197 {approx = true} : vector<8x8x1xf32> -> vector<8x8x1xf32>
    %199 = vector.broadcast %198 : vector<8x8x1xf32> to vector<8x8x8xf32>
    %200 = arith.mulf %195, %199 : vector<8x8x8xf32>
    %201 = arith.truncf %200 : vector<8x8x8xf32> to vector<8x8x8xbf16>
    "tpu.trace_start"() <{level = 10 : i32, message = "zqk,zkd->zqd"}> : () -> ()
    %cst_70 = arith.constant dense<0.000000e+00> : vector<8x8x8xf32>
    %202 = tpu.matmul %201, %187, %cst_70 {dimension_numbers = #tpu.dot_dimension_numbers<[2], [1], [1], [2], [0, 0, 0, 1, 1, 2], [0], [0]>} : vector<8x8x8xbf16>, vector<8x8x8xbf16>, vector<8x8x8xf32> -> vector<8x8x8xf32>
    "tpu.trace_stop"() : () -> ()
    %203 = vector.extract_strided_slice %202 {offsets = [0, 0, 0], sizes = [2, 8, 8], strides = [1, 1, 1]} : vector<8x8x8xf32> to vector<2x8x8xf32>
    %204 = vector.shape_cast %203 : vector<2x8x8xf32> to vector<16x8xf32>
    %205 = vector.extract_strided_slice %202 {offsets = [2, 0, 0], sizes = [2, 8, 8], strides = [1, 1, 1]} : vector<8x8x8xf32> to vector<2x8x8xf32>
    %206 = vector.shape_cast %205 : vector<2x8x8xf32> to vector<16x8xf32>
    %207 = vector.extract_strided_slice %202 {offsets = [4, 0, 0], sizes = [2, 8, 8], strides = [1, 1, 1]} : vector<8x8x8xf32> to vector<2x8x8xf32>
    %208 = vector.shape_cast %207 : vector<2x8x8xf32> to vector<16x8xf32>
    %209 = vector.extract_strided_slice %202 {offsets = [6, 0, 0], sizes = [2, 8, 8], strides = [1, 1, 1]} : vector<8x8x8xf32> to vector<2x8x8xf32>
    %210 = vector.shape_cast %209 : vector<2x8x8xf32> to vector<16x8xf32>
    %211 = tpu.concatenate %204, %206, %208, %210 in 1 : vector<16x8xf32>, vector<16x8xf32>, vector<16x8xf32>, vector<16x8xf32> -> vector<16x32xf32>
    %212 = arith.truncf %211 : vector<16x32xf32> to vector<16x32xbf16>
    %c1_71 = arith.constant 1 : index
    %c0_72 = arith.constant 0 : index
    %c0_73 = arith.constant 0 : index
    %213 = vector.load %arg5[%c1_71, %c0_72, %c0_73] : memref<2x32x32xbf16, #tpu.memory_space<vmem>>, vector<1x32x32xbf16>
    %214 = vector.shape_cast %213 : vector<1x32x32xbf16> to vector<32x32xbf16>
    %cst_74 = arith.constant dense<0.000000e+00> : vector<16x32xf32>
    %215 = tpu.matmul %212, %214, %cst_74 {dimension_numbers = #tpu.dot_dimension_numbers<[1], [0], [0], [1], [0, 0, 1, 1], [], []>} : vector<16x32xbf16>, vector<32x32xbf16>, vector<16x32xf32> -> vector<16x32xf32>
    %c1_75 = arith.constant 1 : index
    %c0_76 = arith.constant 0 : index
    %c0_77 = arith.constant 0 : index
    %216 = vector.load %arg6[%c1_75, %c0_76, %c0_77] : memref<2x1x32xf32, #tpu.memory_space<vmem>>, vector<1x1x32xf32>
    %217 = vector.shape_cast %216 : vector<1x1x32xf32> to vector<1x32xf32>
    %218 = vector.broadcast %217 : vector<1x32xf32> to vector<16x32xf32>
    %219 = arith.addf %215, %218 : vector<16x32xf32>
    %220 = arith.addf %149, %219 : vector<16x32xf32>
    %cst_78 = arith.constant dense<0.000000e+00> : vector<16xf32>
    %221 = vector.multi_reduction <add>, %220, %cst_78 [1] : vector<16x32xf32> to vector<16xf32>
    %222 = vector.shape_cast %221 : vector<16xf32> to vector<16x1xf32>
    %cst_79 = arith.constant 3.200000e+01 : f32
    %223 = vector.broadcast %cst_79 : f32 to vector<16x1xf32>
    %224 = arith.divf %222, %223 : vector<16x1xf32>
    %225 = vector.broadcast %224 : vector<16x1xf32> to vector<16x32xf32>
    %226 = arith.subf %220, %225 : vector<16x32xf32>
    %227 = arith.mulf %226, %226 : vector<16x32xf32>
    %cst_80 = arith.constant dense<0.000000e+00> : vector<16xf32>
    %228 = vector.multi_reduction <add>, %227, %cst_80 [1] : vector<16x32xf32> to vector<16xf32>
    %229 = vector.shape_cast %228 : vector<16xf32> to vector<16x1xf32>
    %cst_81 = arith.constant 3.200000e+01 : f32
    %230 = vector.broadcast %cst_81 : f32 to vector<16x1xf32>
    %231 = arith.divf %229, %230 : vector<16x1xf32>
    %232 = vector.broadcast %224 : vector<16x1xf32> to vector<16x32xf32>
    %233 = arith.subf %220, %232 : vector<16x32xf32>
    %cst_82 = arith.constant 9.99999974E-6 : f32
    %234 = vector.broadcast %cst_82 : f32 to vector<16x1xf32>
    %235 = arith.addf %231, %234 : vector<16x1xf32>
    %236 = math.rsqrt %235 : vector<16x1xf32>
    %237 = vector.broadcast %236 : vector<16x1xf32> to vector<16x32xf32>
    %238 = arith.mulf %233, %237 : vector<16x32xf32>
    %c1_83 = arith.constant 1 : index
    %c0_84 = arith.constant 0 : index
    %c0_85 = arith.constant 0 : index
    %239 = vector.load %arg7[%c1_83, %c0_84, %c0_85] : memref<2x1x32xf32, #tpu.memory_space<vmem>>, vector<1x1x32xf32>
    %240 = vector.shape_cast %239 : vector<1x1x32xf32> to vector<1x32xf32>
    %241 = vector.broadcast %240 : vector<1x32xf32> to vector<16x32xf32>
    %242 = arith.mulf %238, %241 : vector<16x32xf32>
    %c1_86 = arith.constant 1 : index
    %c0_87 = arith.constant 0 : index
    %c0_88 = arith.constant 0 : index
    %243 = vector.load %arg8[%c1_86, %c0_87, %c0_88] : memref<2x1x32xf32, #tpu.memory_space<vmem>>, vector<1x1x32xf32>
    %244 = vector.shape_cast %243 : vector<1x1x32xf32> to vector<1x32xf32>
    %245 = vector.broadcast %244 : vector<1x32xf32> to vector<16x32xf32>
    %246 = arith.addf %242, %245 : vector<16x32xf32>
    %247 = arith.truncf %246 : vector<16x32xf32> to vector<16x32xbf16>
    %c1_89 = arith.constant 1 : index
    %c0_90 = arith.constant 0 : index
    %c0_91 = arith.constant 0 : index
    %248 = vector.load %arg9[%c1_89, %c0_90, %c0_91] : memref<2x32x64xbf16, #tpu.memory_space<vmem>>, vector<1x32x64xbf16>
    %249 = vector.shape_cast %248 : vector<1x32x64xbf16> to vector<32x64xbf16>
    %cst_92 = arith.constant dense<0.000000e+00> : vector<16x64xf32>
    %250 = tpu.matmul %247, %249, %cst_92 {dimension_numbers = #tpu.dot_dimension_numbers<[1], [0], [0], [1], [0, 0, 1, 1], [], []>} : vector<16x32xbf16>, vector<32x64xbf16>, vector<16x64xf32> -> vector<16x64xf32>
    %c1_93 = arith.constant 1 : index
    %c0_94 = arith.constant 0 : index
    %c0_95 = arith.constant 0 : index
    %251 = vector.load %arg10[%c1_93, %c0_94, %c0_95] : memref<2x1x64xf32, #tpu.memory_space<vmem>>, vector<1x1x64xf32>
    %252 = vector.shape_cast %251 : vector<1x1x64xf32> to vector<1x64xf32>
    %253 = vector.broadcast %252 : vector<1x64xf32> to vector<16x64xf32>
    %254 = arith.addf %250, %253 : vector<16x64xf32>
    %cst_96 = arith.constant 0.000000e+00 : f32
    %255 = vector.broadcast %cst_96 : f32 to vector<16x64xf32>
    %256 = arith.maximumf %254, %255 : vector<16x64xf32>
    %257 = arith.truncf %256 : vector<16x64xf32> to vector<16x64xbf16>
    %c1_97 = arith.constant 1 : index
    %c0_98 = arith.constant 0 : index
    %c0_99 = arith.constant 0 : index
    %258 = vector.load %arg11[%c1_97, %c0_98, %c0_99] : memref<2x64x32xbf16, #tpu.memory_space<vmem>>, vector<1x64x32xbf16>
    %259 = vector.shape_cast %258 : vector<1x64x32xbf16> to vector<64x32xbf16>
    %cst_100 = arith.constant dense<0.000000e+00> : vector<16x32xf32>
    %260 = tpu.matmul %257, %259, %cst_100 {dimension_numbers = #tpu.dot_dimension_numbers<[1], [0], [0], [1], [0, 0, 1, 1], [], []>} : vector<16x64xbf16>, vector<64x32xbf16>, vector<16x32xf32> -> vector<16x32xf32>
    %c1_101 = arith.constant 1 : index
    %c0_102 = arith.constant 0 : index
    %c0_103 = arith.constant 0 : index
    %261 = vector.load %arg12[%c1_101, %c0_102, %c0_103] : memref<2x1x32xf32, #tpu.memory_space<vmem>>, vector<1x1x32xf32>
    %262 = vector.shape_cast %261 : vector<1x1x32xf32> to vector<1x32xf32>
    %263 = vector.broadcast %262 : vector<1x32xf32> to vector<16x32xf32>
    %264 = arith.addf %260, %263 : vector<16x32xf32>
    %265 = arith.addf %246, %264 : vector<16x32xf32>
    %cst_104 = arith.constant dense<0.000000e+00> : vector<16xf32>
    %266 = vector.multi_reduction <add>, %265, %cst_104 [1] : vector<16x32xf32> to vector<16xf32>
    %267 = vector.shape_cast %266 : vector<16xf32> to vector<16x1xf32>
    %cst_105 = arith.constant 3.200000e+01 : f32
    %268 = vector.broadcast %cst_105 : f32 to vector<16x1xf32>
    %269 = arith.divf %267, %268 : vector<16x1xf32>
    %270 = vector.broadcast %269 : vector<16x1xf32> to vector<16x32xf32>
    %271 = arith.subf %265, %270 : vector<16x32xf32>
    %272 = arith.mulf %271, %271 : vector<16x32xf32>
    %cst_106 = arith.constant dense<0.000000e+00> : vector<16xf32>
    %273 = vector.multi_reduction <add>, %272, %cst_106 [1] : vector<16x32xf32> to vector<16xf32>
    %274 = vector.shape_cast %273 : vector<16xf32> to vector<16x1xf32>
    %cst_107 = arith.constant 3.200000e+01 : f32
    %275 = vector.broadcast %cst_107 : f32 to vector<16x1xf32>
    %276 = arith.divf %274, %275 : vector<16x1xf32>
    %277 = vector.broadcast %269 : vector<16x1xf32> to vector<16x32xf32>
    %278 = arith.subf %265, %277 : vector<16x32xf32>
    %cst_108 = arith.constant 9.99999974E-6 : f32
    %279 = vector.broadcast %cst_108 : f32 to vector<16x1xf32>
    %280 = arith.addf %276, %279 : vector<16x1xf32>
    %281 = math.rsqrt %280 : vector<16x1xf32>
    %282 = vector.broadcast %281 : vector<16x1xf32> to vector<16x32xf32>
    %283 = arith.mulf %278, %282 : vector<16x32xf32>
    %c1_109 = arith.constant 1 : index
    %c0_110 = arith.constant 0 : index
    %c0_111 = arith.constant 0 : index
    %284 = vector.load %arg13[%c1_109, %c0_110, %c0_111] : memref<2x1x32xf32, #tpu.memory_space<vmem>>, vector<1x1x32xf32>
    %285 = vector.shape_cast %284 : vector<1x1x32xf32> to vector<1x32xf32>
    %286 = vector.broadcast %285 : vector<1x32xf32> to vector<16x32xf32>
    %287 = arith.mulf %283, %286 : vector<16x32xf32>
    %c1_112 = arith.constant 1 : index
    %c0_113 = arith.constant 0 : index
    %c0_114 = arith.constant 0 : index
    %288 = vector.load %arg14[%c1_112, %c0_113, %c0_114] : memref<2x1x32xf32, #tpu.memory_space<vmem>>, vector<1x1x32xf32>
    %289 = vector.shape_cast %288 : vector<1x1x32xf32> to vector<1x32xf32>
    %290 = vector.broadcast %289 : vector<1x32xf32> to vector<16x32xf32>
    %291 = arith.addf %287, %290 : vector<16x32xf32>
    %292 = vector.shape_cast %291 : vector<16x32xf32> to vector<2x8x32xf32>
    %293 = vector.extract_strided_slice %292 {offsets = [0, 0, 0], sizes = [2, 1, 32], strides = [1, 1, 1]} : vector<2x8x32xf32> to vector<2x1x32xf32>
    %294 = vector.shape_cast %293 : vector<2x1x32xf32> to vector<2x32xf32>
    %c0_115 = arith.constant 0 : index
    %c0_116 = arith.constant 0 : index
    %295 = vector.load %arg15[%c0_115, %c0_116] : memref<2x32xf32, #tpu.memory_space<vmem>>, vector<2x32xf32>
    tpu.vector_store %arg15[%c0_115, %c0_116], %294 {strides = array<i32>} : memref<2x32xf32, #tpu.memory_space<vmem>>, vector<2x32xf32>,
    return
  }
  func.func @transform_0(%arg0: i32) -> (i32, i32, i32) {
    %c0_i32 = arith.constant 0 : i32
    %c0_i32_0 = arith.constant 0 : i32
    %c0_i32_1 = arith.constant 0 : i32
    %c0_i32_2 = arith.constant 0 : i32
    return %c0_i32, %c0_i32_0, %c0_i32_1 : i32, i32, i32
  }
  func.func @transform_1(%arg0: i32) -> (i32, i32) {
    %c0_i32 = arith.constant 0 : i32
    %c0_i32_0 = arith.constant 0 : i32
    %c0_i32_1 = arith.constant 0 : i32
    return %c0_i32, %c0_i32_0 : i32, i32
  }
  func.func @transform_2(%arg0: i32) -> (i32, i32, i32) {
    %c0_i32 = arith.constant 0 : i32
    %c0_i32_0 = arith.constant 0 : i32
    %c0_i32_1 = arith.constant 0 : i32
    %c0_i32_2 = arith.constant 0 : i32
    return %c0_i32, %c0_i32_0, %c0_i32_1 : i32, i32, i32
  }
  func.func @transform_3(%arg0: i32) -> (i32, i32, i32) {
    %c0_i32 = arith.constant 0 : i32
    %c0_i32_0 = arith.constant 0 : i32
    %c0_i32_1 = arith.constant 0 : i32
    %c0_i32_2 = arith.constant 0 : i32
    return %c0_i32, %c0_i32_0, %c0_i32_1 : i32, i32, i32
  }
  func.func @transform_4(%arg0: i32) -> (i32, i32, i32) {
    %c0_i32 = arith.constant 0 : i32
    %c0_i32_0 = arith.constant 0 : i32
    %c0_i32_1 = arith.constant 0 : i32
    %c0_i32_2 = arith.constant 0 : i32
    return %c0_i32, %c0_i32_0, %c0_i32_1 : i32, i32, i32
  }
  func.func @transform_5(%arg0: i32) -> (i32, i32, i32) {
    %c0_i32 = arith.constant 0 : i32
    %c0_i32_0 = arith.constant 0 : i32
    %c0_i32_1 = arith.constant 0 : i32
    %c0_i32_2 = arith.constant 0 : i32
    return %c0_i32, %c0_i32_0, %c0_i32_1 : i32, i32, i32
  }
  func.func @transform_6(%arg0: i32) -> (i32, i32, i32) {
    %c0_i32 = arith.constant 0 : i32
    %c0_i32_0 = arith.constant 0 : i32
    %c0_i32_1 = arith.constant 0 : i32
    %c0_i32_2 = arith.constant 0 : i32
    return %c0_i32, %c0_i32_0, %c0_i32_1 : i32, i32, i32
  }
  func.func @transform_7(%arg0: i32) -> (i32, i32, i32) {
    %c0_i32 = arith.constant 0 : i32
    %c0_i32_0 = arith.constant 0 : i32
    %c0_i32_1 = arith.constant 0 : i32
    %c0_i32_2 = arith.constant 0 : i32
    return %c0_i32, %c0_i32_0, %c0_i32_1 : i32, i32, i32
  }
  func.func @transform_8(%arg0: i32) -> (i32, i32, i32) {
    %c0_i32 = arith.constant 0 : i32
    %c0_i32_0 = arith.constant 0 : i32
    %c0_i32_1 = arith.constant 0 : i32
    %c0_i32_2 = arith.constant 0 : i32
    return %c0_i32, %c0_i32_0, %c0_i32_1 : i32, i32, i32
  }
  func.func @transform_9(%arg0: i32) -> (i32, i32, i32) {
    %c0_i32 = arith.constant 0 : i32
    %c0_i32_0 = arith.constant 0 : i32
    %c0_i32_1 = arith.constant 0 : i32
    %c0_i32_2 = arith.constant 0 : i32
    return %c0_i32, %c0_i32_0, %c0_i32_1 : i32, i32, i32
  }
  func.func @transform_10(%arg0: i32) -> (i32, i32, i32) {
    %c0_i32 = arith.constant 0 : i32
    %c0_i32_0 = arith.constant 0 : i32
    %c0_i32_1 = arith.constant 0 : i32
    %c0_i32_2 = arith.constant 0 : i32
    return %c0_i32, %c0_i32_0, %c0_i32_1 : i32, i32, i32
  }
  func.func @transform_11(%arg0: i32) -> (i32, i32, i32) {
    %c0_i32 = arith.constant 0 : i32
    %c0_i32_0 = arith.constant 0 : i32
    %c0_i32_1 = arith.constant 0 : i32
    %c0_i32_2 = arith.constant 0 : i32
    return %c0_i32, %c0_i32_0, %c0_i32_1 : i32, i32, i32
  }
  func.func @transform_12(%arg0: i32) -> (i32, i32, i32) {
    %c0_i32 = arith.constant 0 : i32
    %c0_i32_0 = arith.constant 0 : i32
    %c0_i32_1 = arith.constant 0 : i32
    %c0_i32_2 = arith.constant 0 : i32
    return %c0_i32, %c0_i32_0, %c0_i32_1 : i32, i32, i32
  }
  func.func @transform_13(%arg0: i32) -> (i32, i32, i32) {
    %c0_i32 = arith.constant 0 : i32
    %c0_i32_0 = arith.constant 0 : i32
    %c0_i32_1 = arith.constant 0 : i32
    %c0_i32_2 = arith.constant 0 : i32
    return %c0_i32, %c0_i32_0, %c0_i32_1 : i32, i32, i32
  }
  func.func @transform_14(%arg0: i32) -> (i32, i32) {
    %c0_i32 = arith.constant 0 : i32
    %c0_i32_0 = arith.constant 0 : i32
    %c0_i32_1 = arith.constant 0 : i32
    return %c0_i32, %c0_i32_0 : i32, i32
  }
}

</mosaic_0001>

<llo_original>
// kernel: transformer_forward.1
$region0: #{transformer_forward.1}
  #allocation0 [shape = 'u32[]', space=smem, size = 0x4, offset = 0x4, fixed_abs, tag = 'smem constant byte address 0x4 - core index']
  #allocation1 [shape = 'u32[72,128]{1,0:T(1,128)}', space=vmem, size = 0x9000, scoped, tag = 'internal scratch']
  %s0 = inlined_call_operand.vmem [shape: f32[2,8,32], index: 0, kind: input, shape index: {}]
  %s1 = inlined_call_operand.vmem [shape: f32[8,32], index: 1, kind: input, shape index: {}]
  %s2 = inlined_call_operand.vmem [shape: bf16[2,32,96], index: 2, kind: input, shape index: {}]
  %s3 = inlined_call_operand.vmem [shape: f32[2,1,96], index: 3, kind: input, shape index: {}]
  %s4 = inlined_call_operand.vmem [shape: bf16[2,32,32], index: 4, kind: input, shape index: {}]
  %s5 = inlined_call_operand.vmem [shape: f32[2,1,32], index: 5, kind: input, shape index: {}]
  %s6 = inlined_call_operand.vmem [shape: f32[2,1,32], index: 6, kind: input, shape index: {}]
  %s7 = inlined_call_operand.vmem [shape: f32[2,1,32], index: 7, kind: input, shape index: {}]
  %s8 = inlined_call_operand.vmem [shape: bf16[2,32,64], index: 8, kind: input, shape index: {}]
  %s9 = inlined_call_operand.vmem [shape: f32[2,1,64], index: 9, kind: input, shape index: {}]
  %s10 = inlined_call_operand.vmem [shape: bf16[2,64,32], index: 10, kind: input, shape index: {}]
  %s11 = inlined_call_operand.vmem [shape: f32[2,1,32], index: 11, kind: input, shape index: {}]
  %s12 = inlined_call_operand.vmem [shape: f32[2,1,32], index: 12, kind: input, shape index: {}]
  %s13 = inlined_call_operand.vmem [shape: f32[2,1,32], index: 13, kind: input, shape index: {}]
  %s14 = inlined_call_operand.hbm [shape: f32[2,32], index: 14, kind: output, shape index: {}]
  %s15 = sld [smem:[#allocation0]]
  $region66: #{transformer_forward.1} parent=0
    _
  %s17 = ssub.s32 1, %s15
  %s18 = scalar_select 0, %s17, %s15
  $region1: #{transformer_forward.1} parent=0
    #allocation2 [shape = 'u8[1024]{0}', space=vmem, size = 0x400, scoped, tag = 'output window, operand 0, single buffered']
    #allocation3 [shape = 's32[1]{0}', space=sflag, size = 0x4, scoped, tag = 'scoped memory for transformer_forward.1']
    %19 = vsyncpa [#allocation3], 0
    // Predicated region
    $region2: #{transformer_forward.1} parent=1 // pred_check
      _
    $region3: #{transformer_forward.1} parent=1 // pred_check_branch
      %21 = sbr.rel (0) target = $region5
    $region4: #{transformer_forward.1} parent=1 // pred_region
      _
    $region5: #{transformer_forward.1} parent=1 // pred_fallthru
      _
    // Predicated region
    $region6: #{transformer_forward.1} parent=1 // pred_check
      _
    $region7: #{transformer_forward.1} parent=1 // pred_check_branch
      %23 = sbr.rel (0) target = $region9
    $region8: #{transformer_forward.1} parent=1 // pred_region
      _
    $region9: #{transformer_forward.1} parent=1 // pred_fallthru
      _
    // Predicated region
    $region10: #{transformer_forward.1} parent=1 // pred_check
      _
    $region11: #{transformer_forward.1} parent=1 // pred_check_branch
      %25 = sbr.rel (0) target = $region13
    $region12: #{transformer_forward.1} parent=1 // pred_region
      _
    $region13: #{transformer_forward.1} parent=1 // pred_fallthru
      _
    // Predicated region
    $region14: #{transformer_forward.1} parent=1 // pred_check
      _
    $region15: #{transformer_forward.1} parent=1 // pred_check_branch
      %27 = sbr.rel (0) target = $region17
    $region16: #{transformer_forward.1} parent=1 // pred_region
      _
    $region17: #{transformer_forward.1} parent=1 // pred_fallthru
      _
    // Predicated region
    $region18: #{transformer_forward.1} parent=1 // pred_check
      _
    $region19: #{transformer_forward.1} parent=1 // pred_check_branch
      %29 = sbr.rel (0) target = $region21
    $region20: #{transformer_forward.1} parent=1 // pred_region
      _
    $region21: #{transformer_forward.1} parent=1 // pred_fallthru
      _
    // Predicated region
    $region22: #{transformer_forward.1} parent=1 // pred_check
      _
    $region23: #{transformer_forward.1} parent=1 // pred_check_branch
      %31 = sbr.rel (0) target = $region25
    $region24: #{transformer_forward.1} parent=1 // pred_region
      _
    $region25: #{transformer_forward.1} parent=1 // pred_fallthru
      _
    // Predicated region
    $region26: #{transformer_forward.1} parent=1 // pred_check
      _
    $region27: #{transformer_forward.1} parent=1 // pred_check_branch
      %33 = sbr.rel (0) target = $region29
    $region28: #{transformer_forward.1} parent=1 // pred_region
      _
    $region29: #{transformer_forward.1} parent=1 // pred_fallthru
      _
    // Predicated region
    $region30: #{transformer_forward.1} parent=1 // pred_check
      _
    $region31: #{transformer_forward.1} parent=1 // pred_check_branch
      %35 = sbr.rel (0) target = $region33
    $region32: #{transformer_forward.1} parent=1 // pred_region
      _
    $region33: #{transformer_forward.1} parent=1 // pred_fallthru
      _
    // Predicated region
    $region34: #{transformer_forward.1} parent=1 // pred_check
      _
    $region35: #{transformer_forward.1} parent=1 // pred_check_branch
      %37 = sbr.rel (0) target = $region37
    $region36: #{transformer_forward.1} parent=1 // pred_region
      _
    $region37: #{transformer_forward.1} parent=1 // pred_fallthru
      _
    // Predicated region
    $region38: #{transformer_forward.1} parent=1 // pred_check
      _
    $region39: #{transformer_forward.1} parent=1 // pred_check_branch
      %39 = sbr.rel (0) target = $region41
    $region40: #{transformer_forward.1} parent=1 // pred_region
      _
    $region41: #{transformer_forward.1} parent=1 // pred_fallthru
      _
    // Predicated region
    $region42: #{transformer_forward.1} parent=1 // pred_check
      _
    $region43: #{transformer_forward.1} parent=1 // pred_check_branch
      %41 = sbr.rel (0) target = $region45
    $region44: #{transformer_forward.1} parent=1 // pred_region
      _
    $region45: #{transformer_forward.1} parent=1 // pred_fallthru
      _
    // Predicated region
    $region46: #{transformer_forward.1} parent=1 // pred_check
      _
    $region47: #{transformer_forward.1} parent=1 // pred_check_branch
      %43 = sbr.rel (0) target = $region49
    $region48: #{transformer_forward.1} parent=1 // pred_region
      _
    $region49: #{transformer_forward.1} parent=1 // pred_fallthru
      _
    // Predicated region
    $region50: #{transformer_forward.1} parent=1 // pred_check
      _
    $region51: #{transformer_forward.1} parent=1 // pred_check_branch
      %45 = sbr.rel (0) target = $region53
    $region52: #{transformer_forward.1} parent=1 // pred_region
      _
    $region53: #{transformer_forward.1} parent=1 // pred_fallthru
      _
    // Predicated region
    $region54: #{transformer_forward.1} parent=1 // pred_check
      _
    $region55: #{transformer_forward.1} parent=1 // pred_check_branch
      %47 = sbr.rel (0) target = $region57
    $region56: #{transformer_forward.1} parent=1 // pred_region
      _
    $region57: #{transformer_forward.1} parent=1 // pred_fallthru
      _
    %v49 = vld [vmem:[%s0] sm:$0xff]
    %v50 = vld [vmem:[%s0 + $0x8] sm:$0xff]
    %v51 = vmul.f32 %v49, 5.656854
    %v52 = vmul.f32 %v50, 5.656854
    %v53 = vld [vmem:[%s1] sm:$0xff]
    %v54 = vadd.f32 %v51, %v53
    %v55 = vadd.f32 %v52, %v53
    %v56 = vpack.c.bf16 %v55, %v54
    %v57 = vld [vmem:[%s2] sm:$0xf]
    %v58 = vld [vmem:[%s2 + $0x4] sm:$0xf]
    %v59 = vld [vmem:[%s2 + $0x8] sm:$0xf]
    %v60 = vld [vmem:[%s2 + $0xc] sm:$0xf]
    %v61 = vld [vmem:[%s3] sm:$0x1]
    %v63 = vperm.slane %v61, 0
    %v69 = vunpack.c.l.b16 %v57
    %v70 = vunpack.c.l.b16 %v58
    %v71 = vunpack.c.l.b16 %v59
    %v72 = vunpack.c.l.b16 %v60
    %v73 = vpack.c.b16 %v70, %v69
    %v74 = vpack.c.b16 %v72, %v71
    %vm77 = vcmask 261120
    %v79 = vsel %vm77, %v56, 0
    %81 = vmatpush.bf16.msra.mxu0 0
    %82 = vmatpush.bf16.msra.mxu0 0
    %83 = vmatpush.bf16.msra.mxu0 0
    %84 = vmatpush.bf16.msra.mxu0 0
    %85 = vmatpush.bf16.msra.mxu0 0
    %86 = vmatpush.bf16.msra.mxu0 0
    %87 = vmatpush.bf16.msra.mxu0 %v74
    %88 = vmatpush.bf16.msra.mxu0 %v73
    %89 = vmatmul.bf16.gmra.mxu0 %v79
    %v90 = vpop.f32.mrf.mxu0
    %v91 = vadd.f32 %v63, %v90
    %v92 = vpop.f32.mrf.mxu0
    %v93 = vadd.f32 %v63, %v92
    %94 = vdwg.mxu0
    %97 = vrot.lane.b32.xlu0 %v91, 120
    %v98 = vpop.permute.xlu0 %97
    %99 = vrot.lane.b32.xlu0 %v93, 120
    %v100 = vpop.permute.xlu0 %99
    %103 = vrot.lane.b32.xlu0 %v91, 112
    %v104 = vpop.permute.xlu0 %103
    %105 = vrot.lane.b32.xlu0 %v93, 112
    %v106 = vpop.permute.xlu0 %105
    %109 = vrot.lane.b32.xlu0 %v91, 104
    %v110 = vpop.permute.xlu0 %109
    %111 = vrot.lane.b32.xlu0 %v93, 104
    %v112 = vpop.permute.xlu0 %111
    %v115 = vpack.c.bf16 %v91, %v91
    %v116 = vpack.c.bf16 %v93, %v93
    %v117 = vpack.c.bf16 %v98, %v98
    %v118 = vpack.c.bf16 %v100, %v100
    %v119 = vpack.c.bf16 %v104, %v104
    %v120 = vpack.c.bf16 %v106, %v106
    %v121 = vpack.c.bf16 %v110, %v110
    %v122 = vpack.c.bf16 %v112, %v112
    %v124 = vunpack.c.l.b16 %v115
    %v125 = vpack.c.b16 %v124, %v124
    %126 = vrot.lane.b32.xlu0 %v125, 96
    %v127 = vpop.permute.xlu0 %126
    %vm128 = vcmask 64512
    %v130 = vsel %vm128, %v115, 0
    %v133 = vsel %vm128, %v127, 0
    %135 = vmatpush.bf16.xpose.msra.mxu0 0
    %136 = vmatpush.bf16.xpose.msra.mxu0 0
    %137 = vmatpush.bf16.xpose.msra.mxu0 0
    %138 = vmatpush.bf16.xpose.msra.mxu0 0
    %139 = vmatpush.bf16.xpose.msra.mxu0 0
    %140 = vmatpush.bf16.xpose.msra.mxu0 0
    %141 = vmatpush.bf16.xpose.msra.mxu0 0
    %142 = vmatpush.bf16.xpose.msra.mxu0 %v133
    %143 = vmatmul.bf16.gmra.mxu0 %v130
    %v144 = vpop.f32.mrf.mxu0
    %v145 = vadd.f32 0.0, %v144
    %v146 = vpop.f32.mrf.mxu0
    %147 = vdwg.mxu0
    %v149 = vunpack.c.l.b16 %v116
    %v150 = vpack.c.b16 %v149, %v149
    %151 = vrot.lane.b32.xlu0 %v150, 96
    %v152 = vpop.permute.xlu0 %151
    %v154 = vsel %vm128, %v116, 0
    %v157 = vsel %vm128, %v152, 0
    %159 = vmatpush.bf16.xpose.msra.mxu0 0
    %160 = vmatpush.bf16.xpose.msra.mxu0 0
    %161 = vmatpush.bf16.xpose.msra.mxu0 0
    %162 = vmatpush.bf16.xpose.msra.mxu0 0
    %163 = vmatpush.bf16.xpose.msra.mxu0 0
    %164 = vmatpush.bf16.xpose.msra.mxu0 0
    %165 = vmatpush.bf16.xpose.msra.mxu0 0
    %166 = vmatpush.bf16.xpose.msra.mxu0 %v157
    %167 = vmatmul.bf16.gmra.mxu0 %v154
    %v168 = vpop.f32.mrf.mxu0
    %v169 = vadd.f32 0.0, %v168
    %v170 = vpop.f32.mrf.mxu0
    %171 = vdwg.mxu0
    %v173 = vunpack.c.l.b16 %v117
    %v174 = vpack.c.b16 %v173, %v173
    %175 = vrot.lane.b32.xlu0 %v174, 96
    %v176 = vpop.permute.xlu0 %175
    %v178 = vsel %vm128, %v117, 0
    %v181 = vsel %vm128, %v176, 0
    %183 = vmatpush.bf16.xpose.msra.mxu0 0
    %184 = vmatpush.bf16.xpose.msra.mxu0 0
    %185 = vmatpush.bf16.xpose.msra.mxu0 0
    %186 = vmatpush.bf16.xpose.msra.mxu0 0
    %187 = vmatpush.bf16.xpose.msra.mxu0 0
    %188 = vmatpush.bf16.xpose.msra.mxu0 0
    %189 = vmatpush.bf16.xpose.msra.mxu0 0
    %190 = vmatpush.bf16.xpose.msra.mxu0 %v181
    %191 = vmatmul.bf16.gmra.mxu0 %v178
    %v192 = vpop.f32.mrf.mxu0
    %v193 = vadd.f32 0.0, %v192
    %v194 = vpop.f32.mrf.mxu0
    %195 = vdwg.mxu0
    %v197 = vunpack.c.l.b16 %v118
    %v198 = vpack.c.b16 %v197, %v197
    %199 = vrot.lane.b32.xlu0 %v198, 96
    %v200 = vpop.permute.xlu0 %199
    %v202 = vsel %vm128, %v118, 0
    %v205 = vsel %vm128, %v200, 0
    %207 = vmatpush.bf16.xpose.msra.mxu0 0
    %208 = vmatpush.bf16.xpose.msra.mxu0 0
    %209 = vmatpush.bf16.xpose.msra.mxu0 0
    %210 = vmatpush.bf16.xpose.msra.mxu0 0
    %211 = vmatpush.bf16.xpose.msra.mxu0 0
    %212 = vmatpush.bf16.xpose.msra.mxu0 0
    %213 = vmatpush.bf16.xpose.msra.mxu0 0
    %214 = vmatpush.bf16.xpose.msra.mxu0 %v205
    %215 = vmatmul.bf16.gmra.mxu0 %v202
    %v216 = vpop.f32.mrf.mxu0
    %v217 = vadd.f32 0.0, %v216
    %v218 = vpop.f32.mrf.mxu0
    %219 = vdwg.mxu0
    %v221 = vunpack.c.l.b16 %v119
    %v222 = vpack.c.b16 %v221, %v221
    %223 = vrot.lane.b32.xlu0 %v222, 96
    %v224 = vpop.permute.xlu0 %223
    %v226 = vsel %vm128, %v119, 0
    %v229 = vsel %vm128, %v224, 0
    %231 = vmatpush.bf16.xpose.msra.mxu0 0
    %232 = vmatpush.bf16.xpose.msra.mxu0 0
    %233 = vmatpush.bf16.xpose.msra.mxu0 0
    %234 = vmatpush.bf16.xpose.msra.mxu0 0
    %235 = vmatpush.bf16.xpose.msra.mxu0 0
    %236 = vmatpush.bf16.xpose.msra.mxu0 0
    %237 = vmatpush.bf16.xpose.msra.mxu0 0
    %238 = vmatpush.bf16.xpose.msra.mxu0 %v229
    %239 = vmatmul.bf16.gmra.mxu0 %v226
    %v240 = vpop.f32.mrf.mxu0
    %v241 = vadd.f32 0.0, %v240
    %v242 = vpop.f32.mrf.mxu0
    %243 = vdwg.mxu0
    %v245 = vunpack.c.l.b16 %v120
    %v246 = vpack.c.b16 %v245, %v245
    %247 = vrot.lane.b32.xlu0 %v246, 96
    %v248 = vpop.permute.xlu0 %247
    %v250 = vsel %vm128, %v120, 0
    %v253 = vsel %vm128, %v248, 0
    %255 = vmatpush.bf16.xpose.msra.mxu0 0
    %256 = vmatpush.bf16.xpose.msra.mxu0 0
    %257 = vmatpush.bf16.xpose.msra.mxu0 0
    %258 = vmatpush.bf16.xpose.msra.mxu0 0
    %259 = vmatpush.bf16.xpose.msra.mxu0 0
    %260 = vmatpush.bf16.xpose.msra.mxu0 0
    %261 = vmatpush.bf16.xpose.msra.mxu0 0
    %262 = vmatpush.bf16.xpose.msra.mxu0 %v253
    %263 = vmatmul.bf16.gmra.mxu0 %v250
    %v264 = vpop.f32.mrf.mxu0
    %v265 = vadd.f32 0.0, %v264
    %v266 = vpop.f32.mrf.mxu0
    %267 = vdwg.mxu0
    %v269 = vunpack.c.l.b16 %v121
    %v270 = vpack.c.b16 %v269, %v269
    %271 = vrot.lane.b32.xlu0 %v270, 96
    %v272 = vpop.permute.xlu0 %271
    %v274 = vsel %vm128, %v121, 0
    %v277 = vsel %vm128, %v272, 0
    %279 = vmatpush.bf16.xpose.msra.mxu0 0
    %280 = vmatpush.bf16.xpose.msra.mxu0 0
    %281 = vmatpush.bf16.xpose.msra.mxu0 0
    %282 = vmatpush.bf16.xpose.msra.mxu0 0
    %283 = vmatpush.bf16.xpose.msra.mxu0 0
    %284 = vmatpush.bf16.xpose.msra.mxu0 0
    %285 = vmatpush.bf16.xpose.msra.mxu0 0
    %286 = vmatpush.bf16.xpose.msra.mxu0 %v277
    %287 = vmatmul.bf16.gmra.mxu0 %v274
    %v288 = vpop.f32.mrf.mxu0
    %v289 = vadd.f32 0.0, %v288
    %v290 = vpop.f32.mrf.mxu0
    %291 = vdwg.mxu0
    %v293 = vunpack.c.l.b16 %v122
    %v294 = vpack.c.b16 %v293, %v293
    %295 = vrot.lane.b32.xlu0 %v294, 96
    %v296 = vpop.permute.xlu0 %295
    %v298 = vsel %vm128, %v122, 0
    %v301 = vsel %vm128, %v296, 0
    %303 = vmatpush.bf16.xpose.msra.mxu0 0
    %304 = vmatpush.bf16.xpose.msra.mxu0 0
    %305 = vmatpush.bf16.xpose.msra.mxu0 0
    %306 = vmatpush.bf16.xpose.msra.mxu0 0
    %307 = vmatpush.bf16.xpose.msra.mxu0 0
    %308 = vmatpush.bf16.xpose.msra.mxu0 0
    %309 = vmatpush.bf16.xpose.msra.mxu0 0
    %310 = vmatpush.bf16.xpose.msra.mxu0 %v301
    %311 = vmatmul.bf16.gmra.mxu0 %v298
    %v312 = vpop.f32.mrf.mxu0
    %v313 = vadd.f32 0.0, %v312
    %v314 = vpop.f32.mrf.mxu0
    %315 = vdwg.mxu0
    %v316 = vmul.f32 %v145, 0.35355338
    %v317 = vmul.f32 %v169, 0.35355338
    %v318 = vmul.f32 %v193, 0.35355338
    %v319 = vmul.f32 %v217, 0.35355338
    %v320 = vmul.f32 %v241, 0.35355338
    %v321 = vmul.f32 %v265, 0.35355338
    %v322 = vmul.f32 %v289, 0.35355338
    %v323 = vmul.f32 %v313, 0.35355338
    %v324 = vsel %vm128, %v316, -inf
    %325 = vmax.xlane.f32.xlu0 %v324
    %v326 = vpop.xlane.xlu0 %325
    %v327 = vsel %vm128, %v317, -inf
    %328 = vmax.xlane.f32.xlu0 %v327
    %v329 = vpop.xlane.xlu0 %328
    %v330 = vsel %vm128, %v318, -inf
    %331 = vmax.xlane.f32.xlu0 %v330
    %v332 = vpop.xlane.xlu0 %331
    %v333 = vsel %vm128, %v319, -inf
    %334 = vmax.xlane.f32.xlu0 %v333
    %v335 = vpop.xlane.xlu0 %334
    %v336 = vsel %vm128, %v320, -inf
    %337 = vmax.xlane.f32.xlu0 %v336
    %v338 = vpop.xlane.xlu0 %337
    %v339 = vsel %vm128, %v321, -inf
    %340 = vmax.xlane.f32.xlu0 %v339
    %v341 = vpop.xlane.xlu0 %340
    %v342 = vsel %vm128, %v322, -inf
    %343 = vmax.xlane.f32.xlu0 %v342
    %v344 = vpop.xlane.xlu0 %343
    %v345 = vsel %vm128, %v323, -inf
    %346 = vmax.xlane.f32.xlu0 %v345
    %v347 = vpop.xlane.xlu0 %346
    %v348 = vsub.f32 %v316, %v326
    %v349 = vsub.f32 %v317, %v329
    %v350 = vsub.f32 %v318, %v332
    %v351 = vsub.f32 %v319, %v335
    %v352 = vsub.f32 %v320, %v338
    %v353 = vsub.f32 %v321, %v341
    %v354 = vsub.f32 %v322, %v344
    %v355 = vsub.f32 %v323, %v347
    %v356 = vmul.f32 %v348, 1.442695
    %v357 = vpow.pop %v356
    %v358 = vmul.f32 %v349, 1.442695
    %v359 = vpow.pop %v358
    %v360 = vmul.f32 %v350, 1.442695
    %v361 = vpow.pop %v360
    %v362 = vmul.f32 %v351, 1.442695
    %v363 = vpow.pop %v362
    %v364 = vmul.f32 %v352, 1.442695
    %v365 = vpow.pop %v364
    %v366 = vmul.f32 %v353, 1.442695
    %v367 = vpow.pop %v366
    %v368 = vmul.f32 %v354, 1.442695
    %v369 = vpow.pop %v368
    %v370 = vmul.f32 %v355, 1.442695
    %v371 = vpow.pop %v370
    %v372 = vsel %vm128, %v357, 0.0
    %373 = vadd.xlane.f32.xlu0 %v372
    %v374 = vpop.xlane.xlu0 %373
    %v375 = vsel %vm128, %v359, 0.0
    %376 = vadd.xlane.f32.xlu0 %v375
    %v377 = vpop.xlane.xlu0 %376
    %v378 = vsel %vm128, %v361, 0.0
    %379 = vadd.xlane.f32.xlu0 %v378
    %v380 = vpop.xlane.xlu0 %379
    %v381 = vsel %vm128, %v363, 0.0
    %382 = vadd.xlane.f32.xlu0 %v381
    %v383 = vpop.xlane.xlu0 %382
    %v384 = vsel %vm128, %v365, 0.0
    %385 = vadd.xlane.f32.xlu0 %v384
    %v386 = vpop.xlane.xlu0 %385
    %v387 = vsel %vm128, %v367, 0.0
    %388 = vadd.xlane.f32.xlu0 %v387
    %v389 = vpop.xlane.xlu0 %388
    %v390 = vsel %vm128, %v369, 0.0
    %391 = vadd.xlane.f32.xlu0 %v390
    %v392 = vpop.xlane.xlu0 %391
    %v393 = vsel %vm128, %v371, 0.0
    %394 = vadd.xlane.f32.xlu0 %v393
    %v395 = vpop.xlane.xlu0 %394
    %v396 = vrcp.pop %v374
    %v397 = vrcp.pop %v377
    %v398 = vrcp.pop %v380
    %v399 = vrcp.pop %v383
    %v400 = vrcp.pop %v386
    %v401 = vrcp.pop %v389
    %v402 = vrcp.pop %v392
    %v403 = vrcp.pop %v395
    %v404 = vmul.f32 %v357, %v396
    %v405 = vmul.f32 %v359, %v397
    %v406 = vmul.f32 %v361, %v398
    %v407 = vmul.f32 %v363, %v399
    %v408 = vmul.f32 %v365, %v400
    %v409 = vmul.f32 %v367, %v401
    %v410 = vmul.f32 %v369, %v402
    %v411 = vmul.f32 %v371, %v403
    %v412 = vpack.c.bf16 %v404, %v404
    %v413 = vpack.c.bf16 %v405, %v405
    %v414 = vpack.c.bf16 %v406, %v406
    %v415 = vpack.c.bf16 %v407, %v407
    %v416 = vpack.c.bf16 %v408, %v408
    %v417 = vpack.c.bf16 %v409, %v409
    %v418 = vpack.c.bf16 %v410, %v410
    %v419 = vpack.c.bf16 %v411, %v411
    %420 = vrot.lane.b32.xlu0 %v125, 64
    %v421 = vpop.permute.xlu0 %420
    %v423 = vsel %vm128, %v412, 0
    %vm425 = vcmask 1043456
    %v427 = vsel %vm425, %v421, 0
    %429 = vmatpush.bf16.msra.mxu0 0
    %430 = vmatpush.bf16.msra.mxu0 0
    %431 = vmatpush.bf16.msra.mxu0 0
    %432 = vmatpush.bf16.msra.mxu0 0
    %433 = vmatpush.bf16.msra.mxu0 0
    %434 = vmatpush.bf16.msra.mxu0 0
    %435 = vmatpush.bf16.msra.mxu0 0
    %436 = vmatpush.bf16.msra.mxu0 %v427
    %437 = vmatmul.bf16.gmra.mxu0 %v423
    %v438 = vpop.f32.mrf.mxu0
    %v439 = vadd.f32 0.0, %v438
    %v440 = vpop.f32.mrf.mxu0
    %441 = vdwg.mxu0
    %442 = vrot.lane.b32.xlu0 %v150, 64
    %v443 = vpop.permute.xlu0 %442
    %v445 = vsel %vm128, %v413, 0
    %v448 = vsel %vm425, %v443, 0
    %450 = vmatpush.bf16.msra.mxu0 0
    %451 = vmatpush.bf16.msra.mxu0 0
    %452 = vmatpush.bf16.msra.mxu0 0
    %453 = vmatpush.bf16.msra.mxu0 0
    %454 = vmatpush.bf16.msra.mxu0 0
    %455 = vmatpush.bf16.msra.mxu0 0
    %456 = vmatpush.bf16.msra.mxu0 0
    %457 = vmatpush.bf16.msra.mxu0 %v448
    %458 = vmatmul.bf16.gmra.mxu0 %v445
    %v459 = vpop.f32.mrf.mxu0
    %v460 = vadd.f32 0.0, %v459
    %v461 = vpop.f32.mrf.mxu0
    %462 = vdwg.mxu0
    %463 = vrot.lane.b32.xlu0 %v174, 64
    %v464 = vpop.permute.xlu0 %463
    %v466 = vsel %vm128, %v414, 0
    %v469 = vsel %vm425, %v464, 0
    %471 = vmatpush.bf16.msra.mxu0 0
    %472 = vmatpush.bf16.msra.mxu0 0
    %473 = vmatpush.bf16.msra.mxu0 0
    %474 = vmatpush.bf16.msra.mxu0 0
    %475 = vmatpush.bf16.msra.mxu0 0
    %476 = vmatpush.bf16.msra.mxu0 0
    %477 = vmatpush.bf16.msra.mxu0 0
    %478 = vmatpush.bf16.msra.mxu0 %v469
    %479 = vmatmul.bf16.gmra.mxu0 %v466
    %v480 = vpop.f32.mrf.mxu0
    %v481 = vadd.f32 0.0, %v480
    %v482 = vpop.f32.mrf.mxu0
    %483 = vdwg.mxu0
    %484 = vrot.lane.b32.xlu0 %v198, 64
    %v485 = vpop.permute.xlu0 %484
    %v487 = vsel %vm128, %v415, 0
    %v490 = vsel %vm425, %v485, 0
    %492 = vmatpush.bf16.msra.mxu0 0
    %493 = vmatpush.bf16.msra.mxu0 0
    %494 = vmatpush.bf16.msra.mxu0 0
    %495 = vmatpush.bf16.msra.mxu0 0
    %496 = vmatpush.bf16.msra.mxu0 0
    %497 = vmatpush.bf16.msra.mxu0 0
    %498 = vmatpush.bf16.msra.mxu0 0
    %499 = vmatpush.bf16.msra.mxu0 %v490
    %500 = vmatmul.bf16.gmra.mxu0 %v487
    %v501 = vpop.f32.mrf.mxu0
    %v502 = vadd.f32 0.0, %v501
    %v503 = vpop.f32.mrf.mxu0
    %504 = vdwg.mxu0
    %505 = vrot.lane.b32.xlu0 %v222, 64
    %v506 = vpop.permute.xlu0 %505
    %v508 = vsel %vm128, %v416, 0
    %v511 = vsel %vm425, %v506, 0
    %513 = vmatpush.bf16.msra.mxu0 0
    %514 = vmatpush.bf16.msra.mxu0 0
    %515 = vmatpush.bf16.msra.mxu0 0
    %516 = vmatpush.bf16.msra.mxu0 0
    %517 = vmatpush.bf16.msra.mxu0 0
    %518 = vmatpush.bf16.msra.mxu0 0
    %519 = vmatpush.bf16.msra.mxu0 0
    %520 = vmatpush.bf16.msra.mxu0 %v511
    %521 = vmatmul.bf16.gmra.mxu0 %v508
    %v522 = vpop.f32.mrf.mxu0
    %v523 = vadd.f32 0.0, %v522
    %v524 = vpop.f32.mrf.mxu0
    %525 = vdwg.mxu0
    %526 = vrot.lane.b32.xlu0 %v246, 64
    %v527 = vpop.permute.xlu0 %526
    %v529 = vsel %vm128, %v417, 0
    %v532 = vsel %vm425, %v527, 0
    %534 = vmatpush.bf16.msra.mxu0 0
    %535 = vmatpush.bf16.msra.mxu0 0
    %536 = vmatpush.bf16.msra.mxu0 0
    %537 = vmatpush.bf16.msra.mxu0 0
    %538 = vmatpush.bf16.msra.mxu0 0
    %539 = vmatpush.bf16.msra.mxu0 0
    %540 = vmatpush.bf16.msra.mxu0 0
    %541 = vmatpush.bf16.msra.mxu0 %v532
    %542 = vmatmul.bf16.gmra.mxu0 %v529
    %v543 = vpop.f32.mrf.mxu0
    %v544 = vadd.f32 0.0, %v543
    %v545 = vpop.f32.mrf.mxu0
    %546 = vdwg.mxu0
    %547 = vrot.lane.b32.xlu0 %v270, 64
    %v548 = vpop.permute.xlu0 %547
    %v550 = vsel %vm128, %v418, 0
    %v553 = vsel %vm425, %v548, 0
    %555 = vmatpush.bf16.msra.mxu0 0
    %556 = vmatpush.bf16.msra.mxu0 0
    %557 = vmatpush.bf16.msra.mxu0 0
    %558 = vmatpush.bf16.msra.mxu0 0
    %559 = vmatpush.bf16.msra.mxu0 0
    %560 = vmatpush.bf16.msra.mxu0 0
    %561 = vmatpush.bf16.msra.mxu0 0
    %562 = vmatpush.bf16.msra.mxu0 %v553
    %563 = vmatmul.bf16.gmra.mxu0 %v550
    %v564 = vpop.f32.mrf.mxu0
    %v565 = vadd.f32 0.0, %v564
    %v566 = vpop.f32.mrf.mxu0
    %567 = vdwg.mxu0
    %568 = vrot.lane.b32.xlu0 %v294, 64
    %v569 = vpop.permute.xlu0 %568
    %v571 = vsel %vm128, %v419, 0
    %v574 = vsel %vm425, %v569, 0
    %576 = vmatpush.bf16.msra.mxu0 0
    %577 = vmatpush.bf16.msra.mxu0 0
    %578 = vmatpush.bf16.msra.mxu0 0
    %579 = vmatpush.bf16.msra.mxu0 0
    %580 = vmatpush.bf16.msra.mxu0 0
    %581 = vmatpush.bf16.msra.mxu0 0
    %582 = vmatpush.bf16.msra.mxu0 0
    %583 = vmatpush.bf16.msra.mxu0 %v574
    %584 = vmatmul.bf16.gmra.mxu0 %v571
    %v585 = vpop.f32.mrf.mxu0
    %v586 = vadd.f32 0.0, %v585
    %v587 = vpop.f32.mrf.mxu0
    %588 = vdwg.mxu0
    %591 = vrot.lane.b32.xlu0 %v481, 8
    %v592 = vpop.permute.xlu0 %591
    %593 = vrot.lane.b32.xlu0 %v502, 8
    %v594 = vpop.permute.xlu0 %593
    %599 = vrot.lane.b32.xlu0 %v523, 16
    %v600 = vpop.permute.xlu0 %599
    %601 = vrot.lane.b32.xlu0 %v544, 16
    %v602 = vpop.permute.xlu0 %601
    %607 = vrot.lane.b32.xlu0 %v565, 24
    %v608 = vpop.permute.xlu0 %607
    %609 = vrot.lane.b32.xlu0 %v586, 24
    %v610 = vpop.permute.xlu0 %609
    %v613 = vsel %vm128, %v439, %v592
    %v614 = vsel %vm128, %v460, %v594
    %vm615 = vcmask 130048
    %v616 = vsel %vm615, %v613, %v600
    %v617 = vsel %vm615, %v614, %v602
    %vm618 = vcmask 195584
    %v619 = vsel %vm618, %v616, %v608
    %v620 = vsel %vm618, %v617, %v610
    %v621 = vpack.c.bf16 %v620, %v619
    %v622 = vld [vmem:[%s4] sm:$0xf]
    %v623 = vld [vmem:[%s4 + $0x4] sm:$0xf]
    %v624 = vld [vmem:[%s4 + $0x8] sm:$0xf]
    %v625 = vld [vmem:[%s4 + $0xc] sm:$0xf]
    %v626 = vld [vmem:[%s5] sm:$0x1]
    %v628 = vperm.slane %v626, 0
    %v634 = vunpack.c.l.b16 %v622
    %v635 = vunpack.c.l.b16 %v623
    %v636 = vunpack.c.l.b16 %v624
    %v637 = vunpack.c.l.b16 %v625
    %v638 = vpack.c.b16 %v635, %v634
    %v639 = vpack.c.b16 %v637, %v636
    %v643 = vsel %vm77, %v621, 0
    %645 = vmatpush.bf16.msra.mxu0 0
    %646 = vmatpush.bf16.msra.mxu0 0
    %647 = vmatpush.bf16.msra.mxu0 0
    %648 = vmatpush.bf16.msra.mxu0 0
    %649 = vmatpush.bf16.msra.mxu0 0
    %650 = vmatpush.bf16.msra.mxu0 0
    %651 = vmatpush.bf16.msra.mxu0 %v639
    %652 = vmatpush.bf16.msra.mxu0 %v638
    %653 = vmatmul.bf16.gmra.mxu0 %v643
    %v654 = vpop.f32.mrf.mxu0
    %v655 = vadd.f32 %v628, %v654
    %v656 = vpop.f32.mrf.mxu0
    %v657 = vadd.f32 %v628, %v656
    %658 = vdwg.mxu0
    %v659 = vadd.f32 %v54, %v655
    %v660 = vadd.f32 %v55, %v657
    %v661 = vsel %vm77, %v659, 0.0
    %662 = vadd.xlane.f32.xlu0 %v661
    %v663 = vpop.xlane.xlu0 %662
    %v664 = vsel %vm77, %v660, 0.0
    %665 = vadd.xlane.f32.xlu0 %v664
    %v666 = vpop.xlane.xlu0 %665
    %v667 = vrcp.pop 32.0
    %v668 = vmul.f32 32.0, %v667
    %v669 = vsub.f32 1.0, %v668
    %v670 = vmul.f32 %v667, %v669
    %v671 = vadd.f32 %v667, %v670
    %vm672 = vweird.f32 %v667
    %v673 = vsel %vm672, %v667, %v671
    %v674 = vmul.f32 %v663, %v673
    %v675 = vmul.f32 %v666, %v673
    %v676 = vsub.f32 %v659, %v674
    %v677 = vsub.f32 %v660, %v675
    %v678 = vmul.f32 %v676, %v676
    %v679 = vmul.f32 %v677, %v677
    %v680 = vsel %vm77, %v678, 0.0
    %681 = vadd.xlane.f32.xlu0 %v680
    %v682 = vpop.xlane.xlu0 %681
    %v683 = vsel %vm77, %v679, 0.0
    %684 = vadd.xlane.f32.xlu0 %v683
    %v685 = vpop.xlane.xlu0 %684
    %v686 = vmul.f32 %v682, %v673
    %v687 = vmul.f32 %v685, %v673
    %v688 = vadd.f32 %v686, 1e-05
    %v689 = vadd.f32 %v687, 1e-05
    %v690 = vrsqrt.pop %v688
    %v691 = vmul.f32 %v690, %v688
    %v692 = vmul.f32 %v691, %v690
    %v693 = vmul.f32 0.5, %v692
    %v694 = vsub.f32 1.5, %v693
    %v695 = vmul.f32 %v690, %v694
    %vm696 = vweird.f32 %v688
    %vm697 = vweird.f32 %v690
    %vm698 = vmor %vm696, %vm697
    %v699 = vsel %vm698, %v690, %v695
    %v700 = vrsqrt.pop %v689
    %v701 = vmul.f32 %v700, %v689
    %v702 = vmul.f32 %v701, %v700
    %v703 = vmul.f32 0.5, %v702
    %v704 = vsub.f32 1.5, %v703
    %v705 = vmul.f32 %v700, %v704
    %vm706 = vweird.f32 %v689
    %vm707 = vweird.f32 %v700
    %vm708 = vmor %vm706, %vm707
    %v709 = vsel %vm708, %v700, %v705
    %v710 = vmul.f32 %v676, %v699
    %v711 = vmul.f32 %v677, %v709
    %v712 = vld [vmem:[%s6] sm:$0x1]
    %v714 = vperm.slane %v712, 0
    %v716 = vmul.f32 %v710, %v714
    %v717 = vmul.f32 %v711, %v714
    %v718 = vld [vmem:[%s7] sm:$0x1]
    %v720 = vperm.slane %v718, 0
    %v722 = vadd.f32 %v716, %v720
    %v723 = vadd.f32 %v717, %v720
    %v724 = vpack.c.bf16 %v723, %v722
    %v725 = vld [vmem:[%s8] sm:$0xf]
    %v726 = vld [vmem:[%s8 + $0x4] sm:$0xf]
    %v727 = vld [vmem:[%s8 + $0x8] sm:$0xf]
    %v728 = vld [vmem:[%s8 + $0xc] sm:$0xf]
    %v729 = vld [vmem:[%s9] sm:$0x1]
    %v731 = vperm.slane %v729, 0
    %v737 = vunpack.c.l.b16 %v725
    %v738 = vunpack.c.l.b16 %v726
    %v739 = vunpack.c.l.b16 %v727
    %v740 = vunpack.c.l.b16 %v728
    %v741 = vpack.c.b16 %v738, %v737
    %v742 = vpack.c.b16 %v740, %v739
    %v746 = vsel %vm77, %v724, 0
    %748 = vmatpush.bf16.msra.mxu0 0
    %749 = vmatpush.bf16.msra.mxu0 0
    %750 = vmatpush.bf16.msra.mxu0 0
    %751 = vmatpush.bf16.msra.mxu0 0
    %752 = vmatpush.bf16.msra.mxu0 0
    %753 = vmatpush.bf16.msra.mxu0 0
    %754 = vmatpush.bf16.msra.mxu0 %v742
    %755 = vmatpush.bf16.msra.mxu0 %v741
    %756 = vmatmul.bf16.gmra.mxu0 %v746
    %v757 = vpop.f32.mrf.mxu0
    %v758 = vadd.f32 %v731, %v757
    %v759 = vpop.f32.mrf.mxu0
    %v760 = vadd.f32 %v731, %v759
    %761 = vdwg.mxu0
    %v762 = vmax.f32 %v758, 0.0
    %v763 = vmax.f32 %v760, 0.0
    %v764 = vpack.c.bf16 %v763, %v762
    %v765 = vld [vmem:[%s10] sm:$0xf]
    %v766 = vld [vmem:[%s10 + $0x4] sm:$0xf]
    %v767 = vld [vmem:[%s10 + $0x8] sm:$0xf]
    %v768 = vld [vmem:[%s10 + $0xc] sm:$0xf]
    %v769 = vld [vmem:[%s10 + $0x10] sm:$0xf]
    %v770 = vld [vmem:[%s10 + $0x14] sm:$0xf]
    %v771 = vld [vmem:[%s10 + $0x18] sm:$0xf]
    %v772 = vld [vmem:[%s10 + $0x1c] sm:$0xf]
    %v773 = vld [vmem:[%s11] sm:$0x1]
    %v775 = vperm.slane %v773, 0
    %v785 = vunpack.c.l.b16 %v765
    %v786 = vunpack.c.l.b16 %v766
    %v787 = vunpack.c.l.b16 %v767
    %v788 = vunpack.c.l.b16 %v768
    %v789 = vunpack.c.l.b16 %v769
    %v790 = vunpack.c.l.b16 %v770
    %v791 = vunpack.c.l.b16 %v771
    %v792 = vunpack.c.l.b16 %v772
    %v793 = vpack.c.b16 %v786, %v785
    %v794 = vpack.c.b16 %v788, %v787
    %v795 = vpack.c.b16 %v790, %v789
    %v796 = vpack.c.b16 %v792, %v791
    %vm801 = vcmask 523264
    %v803 = vsel %vm801, %v764, 0
    %805 = vmatpush.bf16.msra.mxu0 0
    %806 = vmatpush.bf16.msra.mxu0 0
    %807 = vmatpush.bf16.msra.mxu0 0
    %808 = vmatpush.bf16.msra.mxu0 0
    %809 = vmatpush.bf16.msra.mxu0 %v796
    %810 = vmatpush.bf16.msra.mxu0 %v795
    %811 = vmatpush.bf16.msra.mxu0 %v794
    %812 = vmatpush.bf16.msra.mxu0 %v793
    %813 = vmatmul.bf16.gmra.mxu0 %v803
    %v814 = vpop.f32.mrf.mxu0
    %v815 = vadd.f32 %v775, %v814
    %v816 = vpop.f32.mrf.mxu0
    %v817 = vadd.f32 %v775, %v816
    %818 = vdwg.mxu0
    %v819 = vadd.f32 %v722, %v815
    %v820 = vadd.f32 %v723, %v817
    %v821 = vsel %vm77, %v819, 0.0
    %822 = vadd.xlane.f32.xlu0 %v821
    %v823 = vpop.xlane.xlu0 %822
    %v824 = vsel %vm77, %v820, 0.0
    %825 = vadd.xlane.f32.xlu0 %v824
    %v826 = vpop.xlane.xlu0 %825
    %v827 = vmul.f32 %v823, %v673
    %v828 = vmul.f32 %v826, %v673
    %v829 = vsub.f32 %v819, %v827
    %v830 = vsub.f32 %v820, %v828
    %v831 = vmul.f32 %v829, %v829
    %v832 = vmul.f32 %v830, %v830
    %v833 = vsel %vm77, %v831, 0.0
    %834 = vadd.xlane.f32.xlu0 %v833
    %v835 = vpop.xlane.xlu0 %834
    %v836 = vsel %vm77, %v832, 0.0
    %837 = vadd.xlane.f32.xlu0 %v836
    %v838 = vpop.xlane.xlu0 %837
    %v839 = vmul.f32 %v835, %v673
    %v840 = vmul.f32 %v838, %v673
    %v841 = vadd.f32 %v839, 1e-05
    %v842 = vadd.f32 %v840, 1e-05
    %v843 = vrsqrt.pop %v841
    %v844 = vmul.f32 %v843, %v841
    %v845 = vmul.f32 %v844, %v843
    %v846 = vmul.f32 0.5, %v845
    %v847 = vsub.f32 1.5, %v846
    %v848 = vmul.f32 %v843, %v847
    %vm849 = vweird.f32 %v841
    %vm850 = vweird.f32 %v843
    %vm851 = vmor %vm849, %vm850
    %v852 = vsel %vm851, %v843, %v848
    %v853 = vrsqrt.pop %v842
    %v854 = vmul.f32 %v853, %v842
    %v855 = vmul.f32 %v854, %v853
    %v856 = vmul.f32 0.5, %v855
    %v857 = vsub.f32 1.5, %v856
    %v858 = vmul.f32 %v853, %v857
    %vm859 = vweird.f32 %v842
    %vm860 = vweird.f32 %v853
    %vm861 = vmor %vm859, %vm860
    %v862 = vsel %vm861, %v853, %v858
    %v863 = vmul.f32 %v829, %v852
    %v864 = vmul.f32 %v830, %v862
    %v865 = vld [vmem:[%s12] sm:$0x1]
    %v867 = vperm.slane %v865, 0
    %v869 = vmul.f32 %v863, %v867
    %v870 = vmul.f32 %v864, %v867
    %v871 = vld [vmem:[%s13] sm:$0x1]
    %v873 = vperm.slane %v871, 0
    %v875 = vadd.f32 %v869, %v873
    %v876 = vadd.f32 %v870, %v873
    %v877 = vpack.c.bf16 %v876, %v875
    %s878 = scalar_lea.vmem %s2, 16
    %v879 = vld [vmem:[%s878] sm:$0xf]
    %v880 = vld [vmem:[%s878 + $0x4] sm:$0xf]
    %v881 = vld [vmem:[%s878 + $0x8] sm:$0xf]
    %v882 = vld [vmem:[%s878 + $0xc] sm:$0xf]
    %s883 = scalar_lea.vmem %s3, 1
    %v884 = vld [vmem:[%s883] sm:$0x1]
    %v886 = vperm.slane %v884, 0
    %v892 = vunpack.c.l.b16 %v879
    %v893 = vunpack.c.l.b16 %v880
    %v894 = vunpack.c.l.b16 %v881
    %v895 = vunpack.c.l.b16 %v882
    %v896 = vpack.c.b16 %v893, %v892
    %v897 = vpack.c.b16 %v895, %v894
    %v901 = vsel %vm77, %v877, 0
    %903 = vmatpush.bf16.msra.mxu0 0
    %904 = vmatpush.bf16.msra.mxu0 0
    %905 = vmatpush.bf16.msra.mxu0 0
    %906 = vmatpush.bf16.msra.mxu0 0
    %907 = vmatpush.bf16.msra.mxu0 0
    %908 = vmatpush.bf16.msra.mxu0 0
    %909 = vmatpush.bf16.msra.mxu0 %v897
    %910 = vmatpush.bf16.msra.mxu0 %v896
    %911 = vmatmul.bf16.gmra.mxu0 %v901
    %v912 = vpop.f32.mrf.mxu0
    %v913 = vadd.f32 %v886, %v912
    %v914 = vpop.f32.mrf.mxu0
    %v915 = vadd.f32 %v886, %v914
    %916 = vdwg.mxu0
    %919 = vrot.lane.b32.xlu0 %v913, 120
    %v920 = vpop.permute.xlu0 %919
    %921 = vrot.lane.b32.xlu0 %v915, 120
    %v922 = vpop.permute.xlu0 %921
    %925 = vrot.lane.b32.xlu0 %v913, 112
    %v926 = vpop.permute.xlu0 %925
    %927 = vrot.lane.b32.xlu0 %v915, 112
    %v928 = vpop.permute.xlu0 %927
    %931 = vrot.lane.b32.xlu0 %v913, 104
    %v932 = vpop.permute.xlu0 %931
    %933 = vrot.lane.b32.xlu0 %v915, 104
    %v934 = vpop.permute.xlu0 %933
    %v937 = vpack.c.bf16 %v913, %v913
    %v938 = vpack.c.bf16 %v915, %v915
    %v939 = vpack.c.bf16 %v920, %v920
    %v940 = vpack.c.bf16 %v922, %v922
    %v941 = vpack.c.bf16 %v926, %v926
    %v942 = vpack.c.bf16 %v928, %v928
    %v943 = vpack.c.bf16 %v932, %v932
    %v944 = vpack.c.bf16 %v934, %v934
    %v946 = vunpack.c.l.b16 %v937
    %v947 = vpack.c.b16 %v946, %v946
    %948 = vrot.lane.b32.xlu0 %v947, 96
    %v949 = vpop.permute.xlu0 %948
    %v951 = vsel %vm128, %v937, 0
    %v954 = vsel %vm128, %v949, 0
    %956 = vmatpush.bf16.xpose.msra.mxu0 0
    %957 = vmatpush.bf16.xpose.msra.mxu0 0
    %958 = vmatpush.bf16.xpose.msra.mxu0 0
    %959 = vmatpush.bf16.xpose.msra.mxu0 0
    %960 = vmatpush.bf16.xpose.msra.mxu0 0
    %961 = vmatpush.bf16.xpose.msra.mxu0 0
    %962 = vmatpush.bf16.xpose.msra.mxu0 0
    %963 = vmatpush.bf16.xpose.msra.mxu0 %v954
    %964 = vmatmul.bf16.gmra.mxu0 %v951
    %v965 = vpop.f32.mrf.mxu0
    %v966 = vadd.f32 0.0, %v965
    %v967 = vpop.f32.mrf.mxu0
    %968 = vdwg.mxu0
    %v970 = vunpack.c.l.b16 %v938
    %v971 = vpack.c.b16 %v970, %v970
    %972 = vrot.lane.b32.xlu0 %v971, 96
    %v973 = vpop.permute.xlu0 %972
    %v975 = vsel %vm128, %v938, 0
    %v978 = vsel %vm128, %v973, 0
    %980 = vmatpush.bf16.xpose.msra.mxu0 0
    %981 = vmatpush.bf16.xpose.msra.mxu0 0
    %982 = vmatpush.bf16.xpose.msra.mxu0 0
    %983 = vmatpush.bf16.xpose.msra.mxu0 0
    %984 = vmatpush.bf16.xpose.msra.mxu0 0
    %985 = vmatpush.bf16.xpose.msra.mxu0 0
    %986 = vmatpush.bf16.xpose.msra.mxu0 0
    %987 = vmatpush.bf16.xpose.msra.mxu0 %v978
    %988 = vmatmul.bf16.gmra.mxu0 %v975
    %v989 = vpop.f32.mrf.mxu0
    %v990 = vadd.f32 0.0, %v989
    %v991 = vpop.f32.mrf.mxu0
    %992 = vdwg.mxu0
    %v994 = vunpack.c.l.b16 %v939
    %v995 = vpack.c.b16 %v994, %v994
    %996 = vrot.lane.b32.xlu0 %v995, 96
    %v997 = vpop.permute.xlu0 %996
    %v999 = vsel %vm128, %v939, 0
    %v1002 = vsel %vm128, %v997, 0
    %1004 = vmatpush.bf16.xpose.msra.mxu0 0
    %1005 = vmatpush.bf16.xpose.msra.mxu0 0
    %1006 = vmatpush.bf16.xpose.msra.mxu0 0
    %1007 = vmatpush.bf16.xpose.msra.mxu0 0
    %1008 = vmatpush.bf16.xpose.msra.mxu0 0
    %1009 = vmatpush.bf16.xpose.msra.mxu0 0
    %1010 = vmatpush.bf16.xpose.msra.mxu0 0
    %1011 = vmatpush.bf16.xpose.msra.mxu0 %v1002
    %1012 = vmatmul.bf16.gmra.mxu0 %v999
    %v1013 = vpop.f32.mrf.mxu0
    %v1014 = vadd.f32 0.0, %v1013
    %v1015 = vpop.f32.mrf.mxu0
    %1016 = vdwg.mxu0
    %v1018 = vunpack.c.l.b16 %v940
    %v1019 = vpack.c.b16 %v1018, %v1018
    %1020 = vrot.lane.b32.xlu0 %v1019, 96
    %v1021 = vpop.permute.xlu0 %1020
    %v1023 = vsel %vm128, %v940, 0
    %v1026 = vsel %vm128, %v1021, 0
    %1028 = vmatpush.bf16.xpose.msra.mxu0 0
    %1029 = vmatpush.bf16.xpose.msra.mxu0 0
    %1030 = vmatpush.bf16.xpose.msra.mxu0 0
    %1031 = vmatpush.bf16.xpose.msra.mxu0 0
    %1032 = vmatpush.bf16.xpose.msra.mxu0 0
    %1033 = vmatpush.bf16.xpose.msra.mxu0 0
    %1034 = vmatpush.bf16.xpose.msra.mxu0 0
    %1035 = vmatpush.bf16.xpose.msra.mxu0 %v1026
    %1036 = vmatmul.bf16.gmra.mxu0 %v1023
    %v1037 = vpop.f32.mrf.mxu0
    %v1038 = vadd.f32 0.0, %v1037
    %v1039 = vpop.f32.mrf.mxu0
    %1040 = vdwg.mxu0
    %v1042 = vunpack.c.l.b16 %v941
    %v1043 = vpack.c.b16 %v1042, %v1042
    %1044 = vrot.lane.b32.xlu0 %v1043, 96
    %v1045 = vpop.permute.xlu0 %1044
    %v1047 = vsel %vm128, %v941, 0
    %v1050 = vsel %vm128, %v1045, 0
    %1052 = vmatpush.bf16.xpose.msra.mxu0 0
    %1053 = vmatpush.bf16.xpose.msra.mxu0 0
    %1054 = vmatpush.bf16.xpose.msra.mxu0 0
    %1055 = vmatpush.bf16.xpose.msra.mxu0 0
    %1056 = vmatpush.bf16.xpose.msra.mxu0 0
    %1057 = vmatpush.bf16.xpose.msra.mxu0 0
    %1058 = vmatpush.bf16.xpose.msra.mxu0 0
    %1059 = vmatpush.bf16.xpose.msra.mxu0 %v1050
    %1060 = vmatmul.bf16.gmra.mxu0 %v1047
    %v1061 = vpop.f32.mrf.mxu0
    %v1062 = vadd.f32 0.0, %v1061
    %v1063 = vpop.f32.mrf.mxu0
    %1064 = vdwg.mxu0
    %v1066 = vunpack.c.l.b16 %v942
    %v1067 = vpack.c.b16 %v1066, %v1066
    %1068 = vrot.lane.b32.xlu0 %v1067, 96
    %v1069 = vpop.permute.xlu0 %1068
    %v1071 = vsel %vm128, %v942, 0
    %v1074 = vsel %vm128, %v1069, 0
    %1076 = vmatpush.bf16.xpose.msra.mxu0 0
    %1077 = vmatpush.bf16.xpose.msra.mxu0 0
    %1078 = vmatpush.bf16.xpose.msra.mxu0 0
    %1079 = vmatpush.bf16.xpose.msra.mxu0 0
    %1080 = vmatpush.bf16.xpose.msra.mxu0 0
    %1081 = vmatpush.bf16.xpose.msra.mxu0 0
    %1082 = vmatpush.bf16.xpose.msra.mxu0 0
    %1083 = vmatpush.bf16.xpose.msra.mxu0 %v1074
    %1084 = vmatmul.bf16.gmra.mxu0 %v1071
    %v1085 = vpop.f32.mrf.mxu0
    %v1086 = vadd.f32 0.0, %v1085
    %v1087 = vpop.f32.mrf.mxu0
    %1088 = vdwg.mxu0
    %v1090 = vunpack.c.l.b16 %v943
    %v1091 = vpack.c.b16 %v1090, %v1090
    %1092 = vrot.lane.b32.xlu0 %v1091, 96
    %v1093 = vpop.permute.xlu0 %1092
    %v1095 = vsel %vm128, %v943, 0
    %v1098 = vsel %vm128, %v1093, 0
    %1100 = vmatpush.bf16.xpose.msra.mxu0 0
    %1101 = vmatpush.bf16.xpose.msra.mxu0 0
    %1102 = vmatpush.bf16.xpose.msra.mxu0 0
    %1103 = vmatpush.bf16.xpose.msra.mxu0 0
    %1104 = vmatpush.bf16.xpose.msra.mxu0 0
    %1105 = vmatpush.bf16.xpose.msra.mxu0 0
    %1106 = vmatpush.bf16.xpose.msra.mxu0 0
    %1107 = vmatpush.bf16.xpose.msra.mxu0 %v1098
    %1108 = vmatmul.bf16.gmra.mxu0 %v1095
    %v1109 = vpop.f32.mrf.mxu0
    %v1110 = vadd.f32 0.0, %v1109
    %v1111 = vpop.f32.mrf.mxu0
    %1112 = vdwg.mxu0
    %v1114 = vunpack.c.l.b16 %v944
    %v1115 = vpack.c.b16 %v1114, %v1114
    %1116 = vrot.lane.b32.xlu0 %v1115, 96
    %v1117 = vpop.permute.xlu0 %1116
    %v1119 = vsel %vm128, %v944, 0
    %v1122 = vsel %vm128, %v1117, 0
    %1124 = vmatpush.bf16.xpose.msra.mxu0 0
    %1125 = vmatpush.bf16.xpose.msra.mxu0 0
    %1126 = vmatpush.bf16.xpose.msra.mxu0 0
    %1127 = vmatpush.bf16.xpose.msra.mxu0 0
    %1128 = vmatpush.bf16.xpose.msra.mxu0 0
    %1129 = vmatpush.bf16.xpose.msra.mxu0 0
    %1130 = vmatpush.bf16.xpose.msra.mxu0 0
    %1131 = vmatpush.bf16.xpose.msra.mxu0 %v1122
    %1132 = vmatmul.bf16.gmra.mxu0 %v1119
    %v1133 = vpop.f32.mrf.mxu0
    %v1134 = vadd.f32 0.0, %v1133
    %v1135 = vpop.f32.mrf.mxu0
    %1136 = vdwg.mxu0
    %v1137 = vmul.f32 %v966, 0.35355338
    %v1138 = vmul.f32 %v990, 0.35355338
    %v1139 = vmul.f32 %v1014, 0.35355338
    %v1140 = vmul.f32 %v1038, 0.35355338
    %v1141 = vmul.f32 %v1062, 0.35355338
    %v1142 = vmul.f32 %v1086, 0.35355338
    %v1143 = vmul.f32 %v1110, 0.35355338
    %v1144 = vmul.f32 %v1134, 0.35355338
    %v1145 = vsel %vm128, %v1137, -inf
    %1146 = vmax.xlane.f32.xlu0 %v1145
    %v1147 = vpop.xlane.xlu0 %1146
    %v1148 = vsel %vm128, %v1138, -inf
    %1149 = vmax.xlane.f32.xlu0 %v1148
    %v1150 = vpop.xlane.xlu0 %1149
    %v1151 = vsel %vm128, %v1139, -inf
    %1152 = vmax.xlane.f32.xlu0 %v1151
    %v1153 = vpop.xlane.xlu0 %1152
    %v1154 = vsel %vm128, %v1140, -inf
    %1155 = vmax.xlane.f32.xlu0 %v1154
    %v1156 = vpop.xlane.xlu0 %1155
    %v1157 = vsel %vm128, %v1141, -inf
    %1158 = vmax.xlane.f32.xlu0 %v1157
    %v1159 = vpop.xlane.xlu0 %1158
    %v1160 = vsel %vm128, %v1142, -inf
    %1161 = vmax.xlane.f32.xlu0 %v1160
    %v1162 = vpop.xlane.xlu0 %1161
    %v1163 = vsel %vm128, %v1143, -inf
    %1164 = vmax.xlane.f32.xlu0 %v1163
    %v1165 = vpop.xlane.xlu0 %1164
    %v1166 = vsel %vm128, %v1144, -inf
    %1167 = vmax.xlane.f32.xlu0 %v1166
    %v1168 = vpop.xlane.xlu0 %1167
    %v1169 = vsub.f32 %v1137, %v1147
    %v1170 = vsub.f32 %v1138, %v1150
    %v1171 = vsub.f32 %v1139, %v1153
    %v1172 = vsub.f32 %v1140, %v1156
    %v1173 = vsub.f32 %v1141, %v1159
    %v1174 = vsub.f32 %v1142, %v1162
    %v1175 = vsub.f32 %v1143, %v1165
    %v1176 = vsub.f32 %v1144, %v1168
    %v1177 = vmul.f32 %v1169, 1.442695
    %v1178 = vpow.pop %v1177
    %v1179 = vmul.f32 %v1170, 1.442695
    %v1180 = vpow.pop %v1179
    %v1181 = vmul.f32 %v1171, 1.442695
    %v1182 = vpow.pop %v1181
    %v1183 = vmul.f32 %v1172, 1.442695
    %v1184 = vpow.pop %v1183
    %v1185 = vmul.f32 %v1173, 1.442695
    %v1186 = vpow.pop %v1185
    %v1187 = vmul.f32 %v1174, 1.442695
    %v1188 = vpow.pop %v1187
    %v1189 = vmul.f32 %v1175, 1.442695
    %v1190 = vpow.pop %v1189
    %v1191 = vmul.f32 %v1176, 1.442695
    %v1192 = vpow.pop %v1191
    %v1193 = vsel %vm128, %v1178, 0.0
    %1194 = vadd.xlane.f32.xlu0 %v1193
    %v1195 = vpop.xlane.xlu0 %1194
    %v1196 = vsel %vm128, %v1180, 0.0
    %1197 = vadd.xlane.f32.xlu0 %v1196
    %v1198 = vpop.xlane.xlu0 %1197
    %v1199 = vsel %vm128, %v1182, 0.0
    %1200 = vadd.xlane.f32.xlu0 %v1199
    %v1201 = vpop.xlane.xlu0 %1200
    %v1202 = vsel %vm128, %v1184, 0.0
    %1203 = vadd.xlane.f32.xlu0 %v1202
    %v1204 = vpop.xlane.xlu0 %1203
    %v1205 = vsel %vm128, %v1186, 0.0
    %1206 = vadd.xlane.f32.xlu0 %v1205
    %v1207 = vpop.xlane.xlu0 %1206
    %v1208 = vsel %vm128, %v1188, 0.0
    %1209 = vadd.xlane.f32.xlu0 %v1208
    %v1210 = vpop.xlane.xlu0 %1209
    %v1211 = vsel %vm128, %v1190, 0.0
    %1212 = vadd.xlane.f32.xlu0 %v1211
    %v1213 = vpop.xlane.xlu0 %1212
    %v1214 = vsel %vm128, %v1192, 0.0
    %1215 = vadd.xlane.f32.xlu0 %v1214
    %v1216 = vpop.xlane.xlu0 %1215
    %v1217 = vrcp.pop %v1195
    %v1218 = vrcp.pop %v1198
    %v1219 = vrcp.pop %v1201
    %v1220 = vrcp.pop %v1204
    %v1221 = vrcp.pop %v1207
    %v1222 = vrcp.pop %v1210
    %v1223 = vrcp.pop %v1213
    %v1224 = vrcp.pop %v1216
    %v1225 = vmul.f32 %v1178, %v1217
    %v1226 = vmul.f32 %v1180, %v1218
    %v1227 = vmul.f32 %v1182, %v1219
    %v1228 = vmul.f32 %v1184, %v1220
    %v1229 = vmul.f32 %v1186, %v1221
    %v1230 = vmul.f32 %v1188, %v1222
    %v1231 = vmul.f32 %v1190, %v1223
    %v1232 = vmul.f32 %v1192, %v1224
    %v1233 = vpack.c.bf16 %v1225, %v1225
    %v1234 = vpack.c.bf16 %v1226, %v1226
    %v1235 = vpack.c.bf16 %v1227, %v1227
    %v1236 = vpack.c.bf16 %v1228, %v1228
    %v1237 = vpack.c.bf16 %v1229, %v1229
    %v1238 = vpack.c.bf16 %v1230, %v1230
    %v1239 = vpack.c.bf16 %v1231, %v1231
    %v1240 = vpack.c.bf16 %v1232, %v1232
    %1241 = vrot.lane.b32.xlu0 %v947, 64
    %v1242 = vpop.permute.xlu0 %1241
    %v1244 = vsel %vm128, %v1233, 0
    %v1247 = vsel %vm425, %v1242, 0
    %1249 = vmatpush.bf16.msra.mxu0 0
    %1250 = vmatpush.bf16.msra.mxu0 0
    %1251 = vmatpush.bf16.msra.mxu0 0
    %1252 = vmatpush.bf16.msra.mxu0 0
    %1253 = vmatpush.bf16.msra.mxu0 0
    %1254 = vmatpush.bf16.msra.mxu0 0
    %1255 = vmatpush.bf16.msra.mxu0 0
    %1256 = vmatpush.bf16.msra.mxu0 %v1247
    %1257 = vmatmul.bf16.gmra.mxu0 %v1244
    %v1258 = vpop.f32.mrf.mxu0
    %v1259 = vadd.f32 0.0, %v1258
    %v1260 = vpop.f32.mrf.mxu0
    %1261 = vdwg.mxu0
    %1262 = vrot.lane.b32.xlu0 %v971, 64
    %v1263 = vpop.permute.xlu0 %1262
    %v1265 = vsel %vm128, %v1234, 0
    %v1268 = vsel %vm425, %v1263, 0
    %1270 = vmatpush.bf16.msra.mxu0 0
    %1271 = vmatpush.bf16.msra.mxu0 0
    %1272 = vmatpush.bf16.msra.mxu0 0
    %1273 = vmatpush.bf16.msra.mxu0 0
    %1274 = vmatpush.bf16.msra.mxu0 0
    %1275 = vmatpush.bf16.msra.mxu0 0
    %1276 = vmatpush.bf16.msra.mxu0 0
    %1277 = vmatpush.bf16.msra.mxu0 %v1268
    %1278 = vmatmul.bf16.gmra.mxu0 %v1265
    %v1279 = vpop.f32.mrf.mxu0
    %v1280 = vadd.f32 0.0, %v1279
    %v1281 = vpop.f32.mrf.mxu0
    %1282 = vdwg.mxu0
    %1283 = vrot.lane.b32.xlu0 %v995, 64
    %v1284 = vpop.permute.xlu0 %1283
    %v1286 = vsel %vm128, %v1235, 0
    %v1289 = vsel %vm425, %v1284, 0
    %1291 = vmatpush.bf16.msra.mxu0 0
    %1292 = vmatpush.bf16.msra.mxu0 0
    %1293 = vmatpush.bf16.msra.mxu0 0
    %1294 = vmatpush.bf16.msra.mxu0 0
    %1295 = vmatpush.bf16.msra.mxu0 0
    %1296 = vmatpush.bf16.msra.mxu0 0
    %1297 = vmatpush.bf16.msra.mxu0 0
    %1298 = vmatpush.bf16.msra.mxu0 %v1289
    %1299 = vmatmul.bf16.gmra.mxu0 %v1286
    %v1300 = vpop.f32.mrf.mxu0
    %v1301 = vadd.f32 0.0, %v1300
    %v1302 = vpop.f32.mrf.mxu0
    %1303 = vdwg.mxu0
    %1304 = vrot.lane.b32.xlu0 %v1019, 64
    %v1305 = vpop.permute.xlu0 %1304
    %v1307 = vsel %vm128, %v1236, 0
    %v1310 = vsel %vm425, %v1305, 0
    %1312 = vmatpush.bf16.msra.mxu0 0
    %1313 = vmatpush.bf16.msra.mxu0 0
    %1314 = vmatpush.bf16.msra.mxu0 0
    %1315 = vmatpush.bf16.msra.mxu0 0
    %1316 = vmatpush.bf16.msra.mxu0 0
    %1317 = vmatpush.bf16.msra.mxu0 0
    %1318 = vmatpush.bf16.msra.mxu0 0
    %1319 = vmatpush.bf16.msra.mxu0 %v1310
    %1320 = vmatmul.bf16.gmra.mxu0 %v1307
    %v1321 = vpop.f32.mrf.mxu0
    %v1322 = vadd.f32 0.0, %v1321
    %v1323 = vpop.f32.mrf.mxu0
    %1324 = vdwg.mxu0
    %1325 = vrot.lane.b32.xlu0 %v1043, 64
    %v1326 = vpop.permute.xlu0 %1325
    %v1328 = vsel %vm128, %v1237, 0
    %v1331 = vsel %vm425, %v1326, 0
    %1333 = vmatpush.bf16.msra.mxu0 0
    %1334 = vmatpush.bf16.msra.mxu0 0
    %1335 = vmatpush.bf16.msra.mxu0 0
    %1336 = vmatpush.bf16.msra.mxu0 0
    %1337 = vmatpush.bf16.msra.mxu0 0
    %1338 = vmatpush.bf16.msra.mxu0 0
    %1339 = vmatpush.bf16.msra.mxu0 0
    %1340 = vmatpush.bf16.msra.mxu0 %v1331
    %1341 = vmatmul.bf16.gmra.mxu0 %v1328
    %v1342 = vpop.f32.mrf.mxu0
    %v1343 = vadd.f32 0.0, %v1342
    %v1344 = vpop.f32.mrf.mxu0
    %1345 = vdwg.mxu0
    %1346 = vrot.lane.b32.xlu0 %v1067, 64
    %v1347 = vpop.permute.xlu0 %1346
    %v1349 = vsel %vm128, %v1238, 0
    %v1352 = vsel %vm425, %v1347, 0
    %1354 = vmatpush.bf16.msra.mxu0 0
    %1355 = vmatpush.bf16.msra.mxu0 0
    %1356 = vmatpush.bf16.msra.mxu0 0
    %1357 = vmatpush.bf16.msra.mxu0 0
    %1358 = vmatpush.bf16.msra.mxu0 0
    %1359 = vmatpush.bf16.msra.mxu0 0
    %1360 = vmatpush.bf16.msra.mxu0 0
    %1361 = vmatpush.bf16.msra.mxu0 %v1352
    %1362 = vmatmul.bf16.gmra.mxu0 %v1349
    %v1363 = vpop.f32.mrf.mxu0
    %v1364 = vadd.f32 0.0, %v1363
    %v1365 = vpop.f32.mrf.mxu0
    %1366 = vdwg.mxu0
    %1367 = vrot.lane.b32.xlu0 %v1091, 64
    %v1368 = vpop.permute.xlu0 %1367
    %v1370 = vsel %vm128, %v1239, 0
    %v1373 = vsel %vm425, %v1368, 0
    %1375 = vmatpush.bf16.msra.mxu0 0
    %1376 = vmatpush.bf16.msra.mxu0 0
    %1377 = vmatpush.bf16.msra.mxu0 0
    %1378 = vmatpush.bf16.msra.mxu0 0
    %1379 = vmatpush.bf16.msra.mxu0 0
    %1380 = vmatpush.bf16.msra.mxu0 0
    %1381 = vmatpush.bf16.msra.mxu0 0
    %1382 = vmatpush.bf16.msra.mxu0 %v1373
    %1383 = vmatmul.bf16.gmra.mxu0 %v1370
    %v1384 = vpop.f32.mrf.mxu0
    %v1385 = vadd.f32 0.0, %v1384
    %v1386 = vpop.f32.mrf.mxu0
    %1387 = vdwg.mxu0
    %1388 = vrot.lane.b32.xlu0 %v1115, 64
    %v1389 = vpop.permute.xlu0 %1388
    %v1391 = vsel %vm128, %v1240, 0
    %v1394 = vsel %vm425, %v1389, 0
    %1396 = vmatpush.bf16.msra.mxu0 0
    %1397 = vmatpush.bf16.msra.mxu0 0
    %1398 = vmatpush.bf16.msra.mxu0 0
    %1399 = vmatpush.bf16.msra.mxu0 0
    %1400 = vmatpush.bf16.msra.mxu0 0
    %1401 = vmatpush.bf16.msra.mxu0 0
    %1402 = vmatpush.bf16.msra.mxu0 0
    %1403 = vmatpush.bf16.msra.mxu0 %v1394
    %1404 = vmatmul.bf16.gmra.mxu0 %v1391
    %v1405 = vpop.f32.mrf.mxu0
    %v1406 = vadd.f32 0.0, %v1405
    %v1407 = vpop.f32.mrf.mxu0
    %1408 = vdwg.mxu0
    %1411 = vrot.lane.b32.xlu0 %v1301, 8
    %v1412 = vpop.permute.xlu0 %1411
    %1413 = vrot.lane.b32.xlu0 %v1322, 8
    %v1414 = vpop.permute.xlu0 %1413
    %1419 = vrot.lane.b32.xlu0 %v1343, 16
    %v1420 = vpop.permute.xlu0 %1419
    %1421 = vrot.lane.b32.xlu0 %v1364, 16
    %v1422 = vpop.permute.xlu0 %1421
    %1427 = vrot.lane.b32.xlu0 %v1385, 24
    %v1428 = vpop.permute.xlu0 %1427
    %1429 = vrot.lane.b32.xlu0 %v1406, 24
    %v1430 = vpop.permute.xlu0 %1429
    %v1433 = vsel %vm128, %v1259, %v1412
    %v1434 = vsel %vm128, %v1280, %v1414
    %v1435 = vsel %vm615, %v1433, %v1420
    %v1436 = vsel %vm615, %v1434, %v1422
    %v1437 = vsel %vm618, %v1435, %v1428
    %v1438 = vsel %vm618, %v1436, %v1430
    %v1439 = vpack.c.bf16 %v1438, %v1437
    %s1440 = scalar_lea.vmem %s4, 16
    %v1441 = vld [vmem:[%s1440] sm:$0xf]
    %v1442 = vld [vmem:[%s1440 + $0x4] sm:$0xf]
    %v1443 = vld [vmem:[%s1440 + $0x8] sm:$0xf]
    %v1444 = vld [vmem:[%s1440 + $0xc] sm:$0xf]
    %s1445 = scalar_lea.vmem %s5, 1
    %v1446 = vld [vmem:[%s1445] sm:$0x1]
    %v1448 = vperm.slane %v1446, 0
    %v1454 = vunpack.c.l.b16 %v1441
    %v1455 = vunpack.c.l.b16 %v1442
    %v1456 = vunpack.c.l.b16 %v1443
    %v1457 = vunpack.c.l.b16 %v1444
    %v1458 = vpack.c.b16 %v1455, %v1454
    %v1459 = vpack.c.b16 %v1457, %v1456
    %v1463 = vsel %vm77, %v1439, 0
    %1465 = vmatpush.bf16.msra.mxu0 0
    %1466 = vmatpush.bf16.msra.mxu0 0
    %1467 = vmatpush.bf16.msra.mxu0 0
    %1468 = vmatpush.bf16.msra.mxu0 0
    %1469 = vmatpush.bf16.msra.mxu0 0
    %1470 = vmatpush.bf16.msra.mxu0 0
    %1471 = vmatpush.bf16.msra.mxu0 %v1459
    %1472 = vmatpush.bf16.msra.mxu0 %v1458
    %1473 = vmatmul.bf16.gmra.mxu0 %v1463
    %v1474 = vpop.f32.mrf.mxu0
    %v1475 = vadd.f32 %v1448, %v1474
    %v1476 = vpop.f32.mrf.mxu0
    %v1477 = vadd.f32 %v1448, %v1476
    %1478 = vdwg.mxu0
    %v1479 = vadd.f32 %v875, %v1475
    %v1480 = vadd.f32 %v876, %v1477
    %v1481 = vsel %vm77, %v1479, 0.0
    %1482 = vadd.xlane.f32.xlu0 %v1481
    %v1483 = vpop.xlane.xlu0 %1482
    %v1484 = vsel %vm77, %v1480, 0.0
    %1485 = vadd.xlane.f32.xlu0 %v1484
    %v1486 = vpop.xlane.xlu0 %1485
    %v1487 = vmul.f32 %v1483, %v673
    %v1488 = vmul.f32 %v1486, %v673
    %v1489 = vsub.f32 %v1479, %v1487
    %v1490 = vsub.f32 %v1480, %v1488
    %v1491 = vmul.f32 %v1489, %v1489
    %v1492 = vmul.f32 %v1490, %v1490
    %v1493 = vsel %vm77, %v1491, 0.0
    %1494 = vadd.xlane.f32.xlu0 %v1493
    %v1495 = vpop.xlane.xlu0 %1494
    %v1496 = vsel %vm77, %v1492, 0.0
    %1497 = vadd.xlane.f32.xlu0 %v1496
    %v1498 = vpop.xlane.xlu0 %1497
    %v1499 = vmul.f32 %v1495, %v673
    %v1500 = vmul.f32 %v1498, %v673
    %v1501 = vadd.f32 %v1499, 1e-05
    %v1502 = vadd.f32 %v1500, 1e-05
    %v1503 = vrsqrt.pop %v1501
    %v1504 = vmul.f32 %v1503, %v1501
    %v1505 = vmul.f32 %v1504, %v1503
    %v1506 = vmul.f32 0.5, %v1505
    %v1507 = vsub.f32 1.5, %v1506
    %v1508 = vmul.f32 %v1503, %v1507
    %vm1509 = vweird.f32 %v1501
    %vm1510 = vweird.f32 %v1503
    %vm1511 = vmor %vm1509, %vm1510
    %v1512 = vsel %vm1511, %v1503, %v1508
    %v1513 = vrsqrt.pop %v1502
    %v1514 = vmul.f32 %v1513, %v1502
    %v1515 = vmul.f32 %v1514, %v1513
    %v1516 = vmul.f32 0.5, %v1515
    %v1517 = vsub.f32 1.5, %v1516
    %v1518 = vmul.f32 %v1513, %v1517
    %vm1519 = vweird.f32 %v1502
    %vm1520 = vweird.f32 %v1513
    %vm1521 = vmor %vm1519, %vm1520
    %v1522 = vsel %vm1521, %v1513, %v1518
    %v1523 = vmul.f32 %v1489, %v1512
    %v1524 = vmul.f32 %v1490, %v1522
    %s1525 = scalar_lea.vmem %s6, 1
    %v1526 = vld [vmem:[%s1525] sm:$0x1]
    %v1528 = vperm.slane %v1526, 0
    %v1530 = vmul.f32 %v1523, %v1528
    %v1531 = vmul.f32 %v1524, %v1528
    %s1532 = scalar_lea.vmem %s7, 1
    %v1533 = vld [vmem:[%s1532] sm:$0x1]
    %v1535 = vperm.slane %v1533, 0
    %v1537 = vadd.f32 %v1530, %v1535
    %v1538 = vadd.f32 %v1531, %v1535
    %v1539 = vpack.c.bf16 %v1538, %v1537
    %s1540 = scalar_lea.vmem %s8, 16
    %v1541 = vld [vmem:[%s1540] sm:$0xf]
    %v1542 = vld [vmem:[%s1540 + $0x4] sm:$0xf]
    %v1543 = vld [vmem:[%s1540 + $0x8] sm:$0xf]
    %v1544 = vld [vmem:[%s1540 + $0xc] sm:$0xf]
    %s1545 = scalar_lea.vmem %s9, 1
    %v1546 = vld [vmem:[%s1545] sm:$0x1]
    %v1548 = vperm.slane %v1546, 0
    %v1554 = vunpack.c.l.b16 %v1541
    %v1555 = vunpack.c.l.b16 %v1542
    %v1556 = vunpack.c.l.b16 %v1543
    %v1557 = vunpack.c.l.b16 %v1544
    %v1558 = vpack.c.b16 %v1555, %v1554
    %v1559 = vpack.c.b16 %v1557, %v1556
    %v1563 = vsel %vm77, %v1539, 0
    %1565 = vmatpush.bf16.msra.mxu0 0
    %1566 = vmatpush.bf16.msra.mxu0 0
    %1567 = vmatpush.bf16.msra.mxu0 0
    %1568 = vmatpush.bf16.msra.mxu0 0
    %1569 = vmatpush.bf16.msra.mxu0 0
    %1570 = vmatpush.bf16.msra.mxu0 0
    %1571 = vmatpush.bf16.msra.mxu0 %v1559
    %1572 = vmatpush.bf16.msra.mxu0 %v1558
    %1573 = vmatmul.bf16.gmra.mxu0 %v1563
    %v1574 = vpop.f32.mrf.mxu0
    %v1575 = vadd.f32 %v1548, %v1574
    %v1576 = vpop.f32.mrf.mxu0
    %v1577 = vadd.f32 %v1548, %v1576
    %1578 = vdwg.mxu0
    %v1579 = vmax.f32 %v1575, 0.0
    %v1580 = vmax.f32 %v1577, 0.0
    %v1581 = vpack.c.bf16 %v1580, %v1579
    %s1582 = scalar_lea.vmem %s10, 32
    %v1583 = vld [vmem:[%s1582] sm:$0xf]
    %v1584 = vld [vmem:[%s1582 + $0x4] sm:$0xf]
    %v1585 = vld [vmem:[%s1582 + $0x8] sm:$0xf]
    %v1586 = vld [vmem:[%s1582 + $0xc] sm:$0xf]
    %v1587 = vld [vmem:[%s1582 + $0x10] sm:$0xf]
    %v1588 = vld [vmem:[%s1582 + $0x14] sm:$0xf]
    %v1589 = vld [vmem:[%s1582 + $0x18] sm:$0xf]
    %v1590 = vld [vmem:[%s1582 + $0x1c] sm:$0xf]
    %s1591 = scalar_lea.vmem %s11, 1
    %v1592 = vld [vmem:[%s1591] sm:$0x1]
    %v1594 = vperm.slane %v1592, 0
    %v1604 = vunpack.c.l.b16 %v1583
    %v1605 = vunpack.c.l.b16 %v1584
    %v1606 = vunpack.c.l.b16 %v1585
    %v1607 = vunpack.c.l.b16 %v1586
    %v1608 = vunpack.c.l.b16 %v1587
    %v1609 = vunpack.c.l.b16 %v1588
    %v1610 = vunpack.c.l.b16 %v1589
    %v1611 = vunpack.c.l.b16 %v1590
    %v1612 = vpack.c.b16 %v1605, %v1604
    %v1613 = vpack.c.b16 %v1607, %v1606
    %v1614 = vpack.c.b16 %v1609, %v1608
    %v1615 = vpack.c.b16 %v1611, %v1610
    %v1621 = vsel %vm801, %v1581, 0
    %1623 = vmatpush.bf16.msra.mxu0 0
    %1624 = vmatpush.bf16.msra.mxu0 0
    %1625 = vmatpush.bf16.msra.mxu0 0
    %1626 = vmatpush.bf16.msra.mxu0 0
    %1627 = vmatpush.bf16.msra.mxu0 %v1615
    %1628 = vmatpush.bf16.msra.mxu0 %v1614
    %1629 = vmatpush.bf16.msra.mxu0 %v1613
    %1630 = vmatpush.bf16.msra.mxu0 %v1612
    %1631 = vmatmul.bf16.gmra.mxu0 %v1621
    %v1632 = vpop.f32.mrf.mxu0
    %v1633 = vadd.f32 %v1594, %v1632
    %v1634 = vpop.f32.mrf.mxu0
    %v1635 = vadd.f32 %v1594, %v1634
    %1636 = vdwg.mxu0
    %v1637 = vadd.f32 %v1537, %v1633
    %v1638 = vadd.f32 %v1538, %v1635
    %v1639 = vsel %vm77, %v1637, 0.0
    %1640 = vadd.xlane.f32.xlu0 %v1639
    %v1641 = vpop.xlane.xlu0 %1640
    %v1642 = vsel %vm77, %v1638, 0.0
    %1643 = vadd.xlane.f32.xlu0 %v1642
    %v1644 = vpop.xlane.xlu0 %1643
    %v1645 = vmul.f32 %v1641, %v673
    %v1646 = vmul.f32 %v1644, %v673
    %v1647 = vsub.f32 %v1637, %v1645
    %v1648 = vsub.f32 %v1638, %v1646
    %v1649 = vmul.f32 %v1647, %v1647
    %v1650 = vmul.f32 %v1648, %v1648
    %v1651 = vsel %vm77, %v1649, 0.0
    %1652 = vadd.xlane.f32.xlu0 %v1651
    %v1653 = vpop.xlane.xlu0 %1652
    %v1654 = vsel %vm77, %v1650, 0.0
    %1655 = vadd.xlane.f32.xlu0 %v1654
    %v1656 = vpop.xlane.xlu0 %1655
    %v1657 = vmul.f32 %v1653, %v673
    %v1658 = vmul.f32 %v1656, %v673
    %v1659 = vadd.f32 %v1657, 1e-05
    %v1660 = vadd.f32 %v1658, 1e-05
    %v1661 = vrsqrt.pop %v1659
    %v1662 = vmul.f32 %v1661, %v1659
    %v1663 = vmul.f32 %v1662, %v1661
    %v1664 = vmul.f32 0.5, %v1663
    %v1665 = vsub.f32 1.5, %v1664
    %v1666 = vmul.f32 %v1661, %v1665
    %vm1667 = vweird.f32 %v1659
    %vm1668 = vweird.f32 %v1661
    %vm1669 = vmor %vm1667, %vm1668
    %v1670 = vsel %vm1669, %v1661, %v1666
    %v1671 = vrsqrt.pop %v1660
    %v1672 = vmul.f32 %v1671, %v1660
    %v1673 = vmul.f32 %v1672, %v1671
    %v1674 = vmul.f32 0.5, %v1673
    %v1675 = vsub.f32 1.5, %v1674
    %v1676 = vmul.f32 %v1671, %v1675
    %vm1677 = vweird.f32 %v1660
    %vm1678 = vweird.f32 %v1671
    %vm1679 = vmor %vm1677, %vm1678
    %v1680 = vsel %vm1679, %v1671, %v1676
    %v1681 = vmul.f32 %v1647, %v1670
    %v1682 = vmul.f32 %v1648, %v1680
    %s1683 = scalar_lea.vmem %s12, 1
    %v1684 = vld [vmem:[%s1683] sm:$0x1]
    %v1686 = vperm.slane %v1684, 0
    %v1688 = vmul.f32 %v1681, %v1686
    %v1689 = vmul.f32 %v1682, %v1686
    %s1690 = scalar_lea.vmem %s13, 1
    %v1691 = vld [vmem:[%s1690] sm:$0x1]
    %v1693 = vperm.slane %v1691, 0
    %v1695 = vadd.f32 %v1688, %v1693
    %v1696 = vadd.f32 %v1689, %v1693
    %v1699 = vrot.slane %v1696, 7
    %vm1700 = vcmask 1041409
    %v1701 = vsel %vm1700, %v1699, %v1695
    %vm1703 = vcmask 254976
    %1704 = vst.msk [vmem:[#allocation2] sm:$0x3] %vm1703, %v1701
    // Predicated region
    $region58: #{transformer_forward.1} parent=1 // pred_check
      _
    $region59: #{transformer_forward.1} parent=1 // pred_check_branch
      %1706 = sbr.rel (0) target = $region61
    $region60: #{transformer_forward.1} parent=1 // pred_region
      %1708 = vsyncadd [#allocation3], 0
      %s1710 = sshll.u32 [#allocation2], 4
      %s1711 = int_to_ptr.vmem [resolvable:$true] %s1710
      %s1712 = sshll.u32 %s14, 4
      %s1713 = int_to_ptr.hbm [resolvable:$true] %s1712
      %1715 = dma.vmem_to_hbm [thread:$0]  %s1711, 32, %s1713, [#allocation3]
    $region61: #{transformer_forward.1} parent=1 // pred_fallthru
      _
    // Predicated region
    $region62: #{transformer_forward.1} parent=1 // pred_check
      _
    $region63: #{transformer_forward.1} parent=1 // pred_check_branch
      %1717 = sbr.rel (0) target = $region65
    $region64: #{transformer_forward.1} parent=1 // pred_region
      %1719 = dma.done [#allocation3], 32
    $region65: #{transformer_forward.1} parent=1 // pred_fallthru
      _
    %1720 = vsyncpa [#allocation3], 1

</llo_original>
